<compile_context>
chip_gen: v7x
topology: tpu7x:2x2x1
jax: 0.10.0
libtpu: 0.0.40
codegen_flags: <defaults>
</compile_context>

<pallas_src>
import functools

import jax
import jax.numpy as jnp
import numpy as np
from jax.experimental import pallas as pl
from jax.experimental.pallas import tpu as pltpu


def convblock_kernel(x_ref, w_ref, prm_ref, brd_ref, o_ref, *,
                     H, W, Cout, groups, cpg, eps):
    # x_ref   : (1, Cin, HW)   f32, HW = H*W on lanes (lane-dense)
    # w_ref   : (9, Cout, Cin) f32 conv weights, tap index k = 3*dy + dx
    # prm_ref : (Cout, 3)      f32 packed [bias, gamma, beta]
    # brd_ref : (2, HW)        f32 horizontal border masks [col>=1, col<=W-2]
    # o_ref   : (1, Cout, HW)  output
    HW = H * W
    x = x_ref[0]                                   # (Cin, HW)

    prm = prm_ref[...]
    bias_col = prm[:, 0:1]                         # (Cout, 1)
    gamma_col = prm[:, 1:2]
    beta_col = prm[:, 2:3]

    # Border-validity masks. Vertical masks are plain lane-iota comparisons;
    # horizontal masks (need col % W) come precomputed from the wrapper.
    pos = jax.lax.broadcasted_iota(jnp.int32, (1, HW), 1)
    vtop = (pos >= W).astype(jnp.float32)          # dy == 0 : input row h-1 >= 0
    vbot = (pos < (H - 1) * W).astype(jnp.float32)  # dy == 2 : input row h+1 <  H
    hleft = brd_ref[0:1, :]                        # dx == 0 : input col w-1 >= 0
    hright = brd_ref[1:2, :]                       # dx == 2 : input col w+1 <  W

    # ---- conv: nine accumulating MXU dots over rolled+masked taps ----
    acc = jnp.zeros((Cout, HW), jnp.float32)
    for dy in range(3):
        for dx in range(3):
            k = 3 * dy + dx
            off = (dy - 1) * W + (dx - 1)          # flat input offset of this tap
            # tap[p] = x[p + off] (wrapped values are masked to zero below)
            tap = x if off == 0 else pltpu.roll(x, (-off) % HW, axis=1)
            m = None
            if dy == 0:
                m = vtop
            elif dy == 2:
                m = vbot
            if dx == 0:
                m = hleft if m is None else m * hleft
            elif dx == 2:
                m = hright if m is None else m * hright
            if m is not None:
                tap = tap * m                      # (1,HW) broadcast over Cin
            acc = acc + jnp.dot(w_ref[k], tap,
                                preferred_element_type=jnp.float32)
    acc = acc + bias_col                           # lane broadcast

    # ---- GroupNorm: lane-reduce first, tiny group combine, fused affine ----
    inv_cnt = 1.0 / float(cpg * HW)
    s = jnp.sum(acc, axis=1, keepdims=True)        # (Cout, 1)
    sq = jnp.sum(acc * acc, axis=1, keepdims=True)  # (Cout, 1)
    s3 = s.reshape(groups, cpg, 1)
    sq3 = sq.reshape(groups, cpg, 1)
    mu_g = jnp.sum(s3, axis=1, keepdims=True) * inv_cnt          # (groups,1,1)
    ex2_g = jnp.sum(sq3, axis=1, keepdims=True) * inv_cnt
    var_g = jnp.maximum(ex2_g - mu_g * mu_g, 0.0)                # biased, like torch
    rstd_g = jax.lax.rsqrt(var_g + eps)
    mu_c = jnp.broadcast_to(mu_g, (groups, cpg, 1)).reshape(Cout, 1)
    rstd_c = jnp.broadcast_to(rstd_g, (groups, cpg, 1)).reshape(Cout, 1)
    scale = gamma_col * rstd_c                                    # (Cout, 1)
    shift = beta_col - mu_c * scale

    # ---- fused normalize + affine + SiLU, single pass over (Cout, HW) ----
    z = acc * scale + shift
    o_ref[0] = (z * jax.nn.sigmoid(z)).astype(o_ref.dtype)


def conv_block_forward(x, weight, bias, gamma, beta, *, groups=8, eps=1e-5,
                       out_dtype=jnp.float32):
    """x: (N,Cin,H,W) f32; weight: (Cout,Cin,3,3) (PyTorch OIHW); bias/gamma/beta: (Cout,)."""
    N, Cin, H, W = x.shape
    Cout = weight.shape[0]
    assert weight.shape == (Cout, Cin, 3, 3)
    assert Cout % groups == 0
    cpg = Cout // groups
    HW = H * W

    # Glue (cheap, no 9x blowup): flatten spatial dims, reorder weights by tap,
    # pack the three per-channel vectors, precompute horizontal border masks.
    x_flat = x.reshape(N, Cin, HW).astype(jnp.float32)
    w_taps = jnp.transpose(weight.astype(jnp.float32), (2, 3, 0, 1)).reshape(9, Cout, Cin)
    params = jnp.stack([bias, gamma, beta], axis=1).astype(jnp.float32)     # (Cout, 3)
    col = np.arange(HW, dtype=np.int64) % W
    border = jnp.asarray(
        np.stack([(col >= 1), (col <= W - 2)]).astype(np.float32))          # (2, HW)

    kernel = functools.partial(convblock_kernel, H=H, W=W, Cout=Cout,
                               groups=groups, cpg=cpg, eps=eps)

    out_isz = jnp.dtype(out_dtype).itemsize
    # Per-grid-step VMEM: double-buffered I/O blocks + headroom for in-kernel temps.
    blk_bytes = (Cin * HW * 4 + 9 * Cout * Cin * 4 + Cout * 3 * 4 + 2 * HW * 4
                 + Cout * HW * out_isz)
    vmem_limit = int(min(max(2 * blk_bytes + 6 * Cout * HW * 4 + (2 << 20),
                             16 << 20), 48 << 20))   # cap keeps v7x (64 MiB) safe

    cost = pl.CostEstimate(
        flops=2 * N * HW * 9 * Cin * Cout + 10 * N * Cout * HW,
        transcendentals=N * Cout * HW,                               # sigmoid
        bytes_accessed=(N * Cin * HW * 4 + 9 * Cout * Cin * 4
                        + Cout * 3 * 4 + 2 * HW * 4
                        + N * Cout * HW * out_isz))

    out = pl.pallas_call(
        kernel,
        out_shape=jax.ShapeDtypeStruct((N, Cout, HW), out_dtype),
        grid_spec=pltpu.PrefetchScalarGridSpec(
            num_scalar_prefetch=0,
            grid=(N,),
            in_specs=[
                pl.BlockSpec((1, Cin, HW), lambda n: (n, 0, 0)),     # image (lane-dense)
                pl.BlockSpec((9, Cout, Cin), lambda n: (0, 0, 0)),   # conv weights per tap
                pl.BlockSpec((Cout, 3), lambda n: (0, 0)),           # packed bias/gamma/beta
                pl.BlockSpec((2, HW), lambda n: (0, 0)),             # horizontal border masks
            ],
            out_specs=pl.BlockSpec((1, Cout, HW), lambda n: (n, 0, 0)),
        ),
        compiler_params=pltpu.CompilerParams(
            dimension_semantics=("parallel",),
            vmem_limit_bytes=vmem_limit,
        ),
        cost_estimate=cost,
    )(x_flat, w_taps, params, border)

    return out.reshape(N, Cout, H, W)   # already NCHW: no output transpose


# ---------------- pure-JAX reference (for correctness check) ----------------
def reference_forward(x, weight, bias, gamma, beta, *, groups=8, eps=1e-5):
    y = jax.lax.conv_general_dilated(
        x, weight, window_strides=(1, 1), padding="SAME",
        dimension_numbers=("NCHW", "OIHW", "NCHW"))
    y = y + bias[None, :, None, None]
    N, C, H, W = y.shape
    yg = y.reshape(N, groups, C // groups, H, W)
    mu = yg.mean(axis=(2, 3, 4), keepdims=True)
    var = yg.var(axis=(2, 3, 4), keepdims=True)   # biased, like torch GroupNorm
    yn = ((yg - mu) / jnp.sqrt(var + eps)).reshape(N, C, H, W)
    z = yn * gamma[None, :, None, None] + beta[None, :, None, None]
    return z * jax.nn.sigmoid(z)


if __name__ == "__main__":
    # small shapes consistent with ConvBlock(dim=4, dim_out=16, groups=8)
    N, Cin, H, W = 2, 4, 16, 16
    Cout, groups = 16, 8

    key = jax.random.PRNGKey(0)
    kx, kw, kb, kg, kbt = jax.random.split(key, 5)
    x = jax.random.normal(kx, (N, Cin, H, W), jnp.float32)
    weight = jax.random.normal(kw, (Cout, Cin, 3, 3), jnp.float32) * 0.1   # OIHW
    bias = jax.random.normal(kb, (Cout,), jnp.float32) * 0.1
    gamma = 1.0 + 0.1 * jax.random.normal(kg, (Cout,), jnp.float32)
    beta = 0.1 * jax.random.normal(kbt, (Cout,), jnp.float32)

    fwd = jax.jit(functools.partial(conv_block_forward, groups=groups))
    out = jax.block_until_ready(fwd(x, weight, bias, gamma, beta))

    ref = reference_forward(x, weight, bias, gamma, beta, groups=groups)
    np.testing.assert_allclose(np.asarray(out), np.asarray(ref),
                               rtol=1e-2, atol=1e-2)
    print("KERNEL_OK")
</pallas_src>

<mosaic_0001>
module attributes {stable_mosaic.version = 11 : i64} {
  func.func @convblock_kernel(%arg0: i32, %arg1: memref<1x4x256xf32, #tpu.memory_space<vmem>>, %arg2: memref<9x16x4xf32, #tpu.memory_space<vmem>>, %arg3: memref<16x3xf32, #tpu.memory_space<vmem>>, %arg4: memref<2x256xf32, #tpu.memory_space<vmem>>, %arg5: memref<1x16x256xf32, #tpu.memory_space<vmem>>) attributes {dimension_semantics = [#tpu.dimension_semantics<parallel>], iteration_bounds = array<i64: 2>, scalar_prefetch = 0 : i64, scratch_operands = 0 : i64, tpu.core_type = #tpu.core_type<tc>, window_params = [{transform_indices = @transform_0, window_bounds = array<i64: 1, 4, 256>}, {pipeline_mode = #tpu.pipeline_mode<synchronous>, transform_indices = @transform_1, window_bounds = array<i64: 9, 16, 4>}, {pipeline_mode = #tpu.pipeline_mode<synchronous>, transform_indices = @transform_2, window_bounds = array<i64: 16, 3>}, {pipeline_mode = #tpu.pipeline_mode<synchronous>, transform_indices = @transform_3, window_bounds = array<i64: 2, 256>}, {transform_indices = @transform_4, window_bounds = array<i64: 1, 16, 256>}]} {
    %c0 = arith.constant 0 : index
    %c0_0 = arith.constant 0 : index
    %c0_1 = arith.constant 0 : index
    %0 = vector.load %arg1[%c0, %c0_0, %c0_1] : memref<1x4x256xf32, #tpu.memory_space<vmem>>, vector<1x4x256xf32>
    %1 = vector.shape_cast %0 : vector<1x4x256xf32> to vector<4x256xf32>
    %c0_2 = arith.constant 0 : index
    %c0_3 = arith.constant 0 : index
    %2 = vector.load %arg3[%c0_2, %c0_3] : memref<16x3xf32, #tpu.memory_space<vmem>>, vector<16x3xf32>
    %3 = vector.extract_strided_slice %2 {offsets = [0, 0], sizes = [16, 1], strides = [1, 1]} : vector<16x3xf32> to vector<16x1xf32>
    %4 = vector.extract_strided_slice %2 {offsets = [0, 1], sizes = [16, 1], strides = [1, 1]} : vector<16x3xf32> to vector<16x1xf32>
    %5 = vector.extract_strided_slice %2 {offsets = [0, 2], sizes = [16, 1], strides = [1, 1]} : vector<16x3xf32> to vector<16x1xf32>
    %6 = tpu.iota {dimensions = array<i32: 1>} : vector<1x256xi32>
    %c16_i32 = arith.constant 16 : i32
    %7 = vector.broadcast %c16_i32 : i32 to vector<1x256xi32>
    %8 = arith.cmpi sge, %6, %7 : vector<1x256xi32>
    %9 = arith.extui %8 : vector<1x256xi1> to vector<1x256xi32>
    %10 = arith.sitofp %9 : vector<1x256xi32> to vector<1x256xf32>
    %c240_i32 = arith.constant 240 : i32
    %11 = vector.broadcast %c240_i32 : i32 to vector<1x256xi32>
    %12 = arith.cmpi slt, %6, %11 : vector<1x256xi32>
    %13 = arith.extui %12 : vector<1x256xi1> to vector<1x256xi32>
    %14 = arith.sitofp %13 : vector<1x256xi32> to vector<1x256xf32>
    %c0_4 = arith.constant 0 : index
    %c0_5 = arith.constant 0 : index
    %15 = vector.load %arg4[%c0_4, %c0_5] : memref<2x256xf32, #tpu.memory_space<vmem>>, vector<1x256xf32>
    %c1 = arith.constant 1 : index
    %c0_6 = arith.constant 0 : index
    %16 = vector.load %arg4[%c1, %c0_6] : memref<2x256xf32, #tpu.memory_space<vmem>>, vector<1x256xf32>
    %cst = arith.constant 0.000000e+00 : f32
    %17 = vector.broadcast %cst : f32 to vector<16x256xf32>
    %c17_i32 = arith.constant 17 : i32
    %18 = tpu.dynamic_rotate %1 by %c17_i32 dim 1 : vector<4x256xf32>, i32 -> vector<4x256xf32>
    %19 = arith.mulf %10, %15 : vector<1x256xf32>
    %20 = vector.broadcast %19 : vector<1x256xf32> to vector<4x256xf32>
    %21 = arith.mulf %18, %20 : vector<4x256xf32>
    %c0_7 = arith.constant 0 : index
    %c0_8 = arith.constant 0 : index
    %c0_9 = arith.constant 0 : index
    %22 = vector.load %arg2[%c0_7, %c0_8, %c0_9] : memref<9x16x4xf32, #tpu.memory_space<vmem>>, vector<1x16x4xf32>
    %23 = vector.shape_cast %22 : vector<1x16x4xf32> to vector<16x4xf32>
    %cst_10 = arith.constant dense<0.000000e+00> : vector<16x256xf32>
    %24 = tpu.matmul %23, %21, %cst_10 {dimension_numbers = #tpu.dot_dimension_numbers<[1], [0], [0], [1], [0, 0, 1, 1], [], []>} : vector<16x4xf32>, vector<4x256xf32>, vector<16x256xf32> -> vector<16x256xf32>
    %25 = arith.addf %17, %24 : vector<16x256xf32>
    %c16_i32_11 = arith.constant 16 : i32
    %26 = tpu.dynamic_rotate %1 by %c16_i32_11 dim 1 : vector<4x256xf32>, i32 -> vector<4x256xf32>
    %27 = vector.broadcast %10 : vector<1x256xf32> to vector<4x256xf32>
    %28 = arith.mulf %26, %27 : vector<4x256xf32>
    %c1_12 = arith.constant 1 : index
    %c0_13 = arith.constant 0 : index
    %c0_14 = arith.constant 0 : index
    %29 = vector.load %arg2[%c1_12, %c0_13, %c0_14] : memref<9x16x4xf32, #tpu.memory_space<vmem>>, vector<1x16x4xf32>
    %30 = vector.shape_cast %29 : vector<1x16x4xf32> to vector<16x4xf32>
    %cst_15 = arith.constant dense<0.000000e+00> : vector<16x256xf32>
    %31 = tpu.matmul %30, %28, %cst_15 {dimension_numbers = #tpu.dot_dimension_numbers<[1], [0], [0], [1], [0, 0, 1, 1], [], []>} : vector<16x4xf32>, vector<4x256xf32>, vector<16x256xf32> -> vector<16x256xf32>
    %32 = arith.addf %25, %31 : vector<16x256xf32>
    %c15_i32 = arith.constant 15 : i32
    %33 = tpu.dynamic_rotate %1 by %c15_i32 dim 1 : vector<4x256xf32>, i32 -> vector<4x256xf32>
    %34 = arith.mulf %10, %16 : vector<1x256xf32>
    %35 = vector.broadcast %34 : vector<1x256xf32> to vector<4x256xf32>
    %36 = arith.mulf %33, %35 : vector<4x256xf32>
    %c2 = arith.constant 2 : index
    %c0_16 = arith.constant 0 : index
    %c0_17 = arith.constant 0 : index
    %37 = vector.load %arg2[%c2, %c0_16, %c0_17] : memref<9x16x4xf32, #tpu.memory_space<vmem>>, vector<1x16x4xf32>
    %38 = vector.shape_cast %37 : vector<1x16x4xf32> to vector<16x4xf32>
    %cst_18 = arith.constant dense<0.000000e+00> : vector<16x256xf32>
    %39 = tpu.matmul %38, %36, %cst_18 {dimension_numbers = #tpu.dot_dimension_numbers<[1], [0], [0], [1], [0, 0, 1, 1], [], []>} : vector<16x4xf32>, vector<4x256xf32>, vector<16x256xf32> -> vector<16x256xf32>
    %40 = arith.addf %32, %39 : vector<16x256xf32>
    %c1_i32 = arith.constant 1 : i32
    %41 = tpu.dynamic_rotate %1 by %c1_i32 dim 1 : vector<4x256xf32>, i32 -> vector<4x256xf32>
    %42 = vector.broadcast %15 : vector<1x256xf32> to vector<4x256xf32>
    %43 = arith.mulf %41, %42 : vector<4x256xf32>
    %c3 = arith.constant 3 : index
    %c0_19 = arith.constant 0 : index
    %c0_20 = arith.constant 0 : index
    %44 = vector.load %arg2[%c3, %c0_19, %c0_20] : memref<9x16x4xf32, #tpu.memory_space<vmem>>, vector<1x16x4xf32>
    %45 = vector.shape_cast %44 : vector<1x16x4xf32> to vector<16x4xf32>
    %cst_21 = arith.constant dense<0.000000e+00> : vector<16x256xf32>
    %46 = tpu.matmul %45, %43, %cst_21 {dimension_numbers = #tpu.dot_dimension_numbers<[1], [0], [0], [1], [0, 0, 1, 1], [], []>} : vector<16x4xf32>, vector<4x256xf32>, vector<16x256xf32> -> vector<16x256xf32>
    %47 = arith.addf %40, %46 : vector<16x256xf32>
    %c4 = arith.constant 4 : index
    %c0_22 = arith.constant 0 : index
    %c0_23 = arith.constant 0 : index
    %48 = vector.load %arg2[%c4, %c0_22, %c0_23] : memref<9x16x4xf32, #tpu.memory_space<vmem>>, vector<1x16x4xf32>
    %49 = vector.shape_cast %48 : vector<1x16x4xf32> to vector<16x4xf32>
    %cst_24 = arith.constant dense<0.000000e+00> : vector<16x256xf32>
    %50 = tpu.matmul %49, %1, %cst_24 {dimension_numbers = #tpu.dot_dimension_numbers<[1], [0], [0], [1], [0, 0, 1, 1], [], []>} : vector<16x4xf32>, vector<4x256xf32>, vector<16x256xf32> -> vector<16x256xf32>
    %51 = arith.addf %47, %50 : vector<16x256xf32>
    %c255_i32 = arith.constant 255 : i32
    %52 = tpu.dynamic_rotate %1 by %c255_i32 dim 1 : vector<4x256xf32>, i32 -> vector<4x256xf32>
    %53 = vector.broadcast %16 : vector<1x256xf32> to vector<4x256xf32>
    %54 = arith.mulf %52, %53 : vector<4x256xf32>
    %c5 = arith.constant 5 : index
    %c0_25 = arith.constant 0 : index
    %c0_26 = arith.constant 0 : index
    %55 = vector.load %arg2[%c5, %c0_25, %c0_26] : memref<9x16x4xf32, #tpu.memory_space<vmem>>, vector<1x16x4xf32>
    %56 = vector.shape_cast %55 : vector<1x16x4xf32> to vector<16x4xf32>
    %cst_27 = arith.constant dense<0.000000e+00> : vector<16x256xf32>
    %57 = tpu.matmul %56, %54, %cst_27 {dimension_numbers = #tpu.dot_dimension_numbers<[1], [0], [0], [1], [0, 0, 1, 1], [], []>} : vector<16x4xf32>, vector<4x256xf32>, vector<16x256xf32> -> vector<16x256xf32>
    %58 = arith.addf %51, %57 : vector<16x256xf32>
    %c241_i32 = arith.constant 241 : i32
    %59 = tpu.dynamic_rotate %1 by %c241_i32 dim 1 : vector<4x256xf32>, i32 -> vector<4x256xf32>
    %60 = arith.mulf %14, %15 : vector<1x256xf32>
    %61 = vector.broadcast %60 : vector<1x256xf32> to vector<4x256xf32>
    %62 = arith.mulf %59, %61 : vector<4x256xf32>
    %c6 = arith.constant 6 : index
    %c0_28 = arith.constant 0 : index
    %c0_29 = arith.constant 0 : index
    %63 = vector.load %arg2[%c6, %c0_28, %c0_29] : memref<9x16x4xf32, #tpu.memory_space<vmem>>, vector<1x16x4xf32>
    %64 = vector.shape_cast %63 : vector<1x16x4xf32> to vector<16x4xf32>
    %cst_30 = arith.constant dense<0.000000e+00> : vector<16x256xf32>
    %65 = tpu.matmul %64, %62, %cst_30 {dimension_numbers = #tpu.dot_dimension_numbers<[1], [0], [0], [1], [0, 0, 1, 1], [], []>} : vector<16x4xf32>, vector<4x256xf32>, vector<16x256xf32> -> vector<16x256xf32>
    %66 = arith.addf %58, %65 : vector<16x256xf32>
    %c240_i32_31 = arith.constant 240 : i32
    %67 = tpu.dynamic_rotate %1 by %c240_i32_31 dim 1 : vector<4x256xf32>, i32 -> vector<4x256xf32>
    %68 = vector.broadcast %14 : vector<1x256xf32> to vector<4x256xf32>
    %69 = arith.mulf %67, %68 : vector<4x256xf32>
    %c7 = arith.constant 7 : index
    %c0_32 = arith.constant 0 : index
    %c0_33 = arith.constant 0 : index
    %70 = vector.load %arg2[%c7, %c0_32, %c0_33] : memref<9x16x4xf32, #tpu.memory_space<vmem>>, vector<1x16x4xf32>
    %71 = vector.shape_cast %70 : vector<1x16x4xf32> to vector<16x4xf32>
    %cst_34 = arith.constant dense<0.000000e+00> : vector<16x256xf32>
    %72 = tpu.matmul %71, %69, %cst_34 {dimension_numbers = #tpu.dot_dimension_numbers<[1], [0], [0], [1], [0, 0, 1, 1], [], []>} : vector<16x4xf32>, vector<4x256xf32>, vector<16x256xf32> -> vector<16x256xf32>
    %73 = arith.addf %66, %72 : vector<16x256xf32>
    %c239_i32 = arith.constant 239 : i32
    %74 = tpu.dynamic_rotate %1 by %c239_i32 dim 1 : vector<4x256xf32>, i32 -> vector<4x256xf32>
    %75 = arith.mulf %14, %16 : vector<1x256xf32>
    %76 = vector.broadcast %75 : vector<1x256xf32> to vector<4x256xf32>
    %77 = arith.mulf %74, %76 : vector<4x256xf32>
    %c8 = arith.constant 8 : index
    %c0_35 = arith.constant 0 : index
    %c0_36 = arith.constant 0 : index
    %78 = vector.load %arg2[%c8, %c0_35, %c0_36] : memref<9x16x4xf32, #tpu.memory_space<vmem>>, vector<1x16x4xf32>
    %79 = vector.shape_cast %78 : vector<1x16x4xf32> to vector<16x4xf32>
    %cst_37 = arith.constant dense<0.000000e+00> : vector<16x256xf32>
    %80 = tpu.matmul %79, %77, %cst_37 {dimension_numbers = #tpu.dot_dimension_numbers<[1], [0], [0], [1], [0, 0, 1, 1], [], []>} : vector<16x4xf32>, vector<4x256xf32>, vector<16x256xf32> -> vector<16x256xf32>
    %81 = arith.addf %73, %80 : vector<16x256xf32>
    %82 = vector.broadcast %3 : vector<16x1xf32> to vector<16x256xf32>
    %83 = arith.addf %81, %82 : vector<16x256xf32>
    %cst_38 = arith.constant dense<0.000000e+00> : vector<16xf32>
    %84 = vector.multi_reduction <add>, %83, %cst_38 [1] : vector<16x256xf32> to vector<16xf32>
    %85 = vector.shape_cast %84 : vector<16xf32> to vector<16x1xf32>
    %86 = arith.mulf %83, %83 : vector<16x256xf32>
    %cst_39 = arith.constant dense<0.000000e+00> : vector<16xf32>
    %87 = vector.multi_reduction <add>, %86, %cst_39 [1] : vector<16x256xf32> to vector<16xf32>
    %88 = vector.shape_cast %87 : vector<16xf32> to vector<16x1xf32>
    %89 = vector.shape_cast %85 : vector<16x1xf32> to vector<8x2x1xf32>
    %90 = vector.shape_cast %88 : vector<16x1xf32> to vector<8x2x1xf32>
    %cst_40 = arith.constant dense<0.000000e+00> : vector<8x1xf32>
    %91 = vector.multi_reduction <add>, %89, %cst_40 [1] : vector<8x2x1xf32> to vector<8x1xf32>
    %92 = vector.shape_cast %91 : vector<8x1xf32> to vector<8x1x1xf32>
    %cst_41 = arith.constant 0.001953125 : f32
    %93 = vector.broadcast %cst_41 : f32 to vector<8x1x1xf32>
    %94 = arith.mulf %92, %93 : vector<8x1x1xf32>
    %cst_42 = arith.constant dense<0.000000e+00> : vector<8x1xf32>
    %95 = vector.multi_reduction <add>, %90, %cst_42 [1] : vector<8x2x1xf32> to vector<8x1xf32>
    %96 = vector.shape_cast %95 : vector<8x1xf32> to vector<8x1x1xf32>
    %cst_43 = arith.constant 0.001953125 : f32
    %97 = vector.broadcast %cst_43 : f32 to vector<8x1x1xf32>
    %98 = arith.mulf %96, %97 : vector<8x1x1xf32>
    %99 = arith.mulf %94, %94 : vector<8x1x1xf32>
    %100 = arith.subf %98, %99 : vector<8x1x1xf32>
    %cst_44 = arith.constant 0.000000e+00 : f32
    %101 = vector.broadcast %cst_44 : f32 to vector<8x1x1xf32>
    %102 = arith.maximumf %100, %101 : vector<8x1x1xf32>
    %cst_45 = arith.constant 9.99999974E-6 : f32
    %103 = vector.broadcast %cst_45 : f32 to vector<8x1x1xf32>
    %104 = arith.addf %102, %103 : vector<8x1x1xf32>
    %105 = math.rsqrt %104 : vector<8x1x1xf32>
    %106 = vector.shape_cast %94 : vector<8x1x1xf32> to vector<8x1x1xf32>
    %107 = vector.broadcast %106 : vector<8x1x1xf32> to vector<8x2x1xf32>
    %108 = vector.shape_cast %107 : vector<8x2x1xf32> to vector<16x1xf32>
    %109 = vector.shape_cast %105 : vector<8x1x1xf32> to vector<8x1x1xf32>
    %110 = vector.broadcast %109 : vector<8x1x1xf32> to vector<8x2x1xf32>
    %111 = vector.shape_cast %110 : vector<8x2x1xf32> to vector<16x1xf32>
    %112 = arith.mulf %4, %111 : vector<16x1xf32>
    %113 = arith.mulf %108, %112 : vector<16x1xf32>
    %114 = arith.subf %5, %113 : vector<16x1xf32>
    %115 = vector.broadcast %112 : vector<16x1xf32> to vector<16x256xf32>
    %116 = arith.mulf %83, %115 : vector<16x256xf32>
    %117 = vector.broadcast %114 : vector<16x1xf32> to vector<16x256xf32>
    %118 = arith.addf %116, %117 : vector<16x256xf32>
    %119 = arith.negf %118 : vector<16x256xf32>
    %120 = math.exp %119 : vector<16x256xf32>
    %cst_46 = arith.constant 1.000000e+00 : f32
    %121 = vector.broadcast %cst_46 : f32 to vector<16x256xf32>
    %122 = arith.addf %121, %120 : vector<16x256xf32>
    %123 = arith.divf %121, %122 : vector<16x256xf32>
    %124 = arith.mulf %118, %123 : vector<16x256xf32>
    %c0_47 = arith.constant 0 : index
    %c0_48 = arith.constant 0 : index
    %c0_49 = arith.constant 0 : index
    %125 = vector.load %arg5[%c0_47, %c0_48, %c0_49] : memref<1x16x256xf32, #tpu.memory_space<vmem>>, vector<1x16x256xf32>
    %126 = vector.shape_cast %125 : vector<1x16x256xf32> to vector<16x256xf32>
    %127 = vector.shape_cast %124 : vector<16x256xf32> to vector<1x16x256xf32>
    tpu.vector_store %arg5[%c0_47, %c0_48, %c0_49], %127 {strides = array<i32>} : memref<1x16x256xf32, #tpu.memory_space<vmem>>, vector<1x16x256xf32>,
    return
  }
  func.func @transform_0(%arg0: i32) -> (i32, i32, i32) {
    %c0_i32 = arith.constant 0 : i32
    %c0_i32_0 = arith.constant 0 : i32
    %c0_i32_1 = arith.constant 0 : i32
    return %arg0, %c0_i32, %c0_i32_0 : i32, i32, i32
  }
  func.func @transform_1(%arg0: i32) -> (i32, i32, i32) {
    %c0_i32 = arith.constant 0 : i32
    %c0_i32_0 = arith.constant 0 : i32
    %c0_i32_1 = arith.constant 0 : i32
    %c0_i32_2 = arith.constant 0 : i32
    return %c0_i32, %c0_i32_0, %c0_i32_1 : i32, i32, i32
  }
  func.func @transform_2(%arg0: i32) -> (i32, i32) {
    %c0_i32 = arith.constant 0 : i32
    %c0_i32_0 = arith.constant 0 : i32
    %c0_i32_1 = arith.constant 0 : i32
    return %c0_i32, %c0_i32_0 : i32, i32
  }
  func.func @transform_3(%arg0: i32) -> (i32, i32) {
    %c0_i32 = arith.constant 0 : i32
    %c0_i32_0 = arith.constant 0 : i32
    %c0_i32_1 = arith.constant 0 : i32
    return %c0_i32, %c0_i32_0 : i32, i32
  }
  func.func @transform_4(%arg0: i32) -> (i32, i32, i32) {
    %c0_i32 = arith.constant 0 : i32
    %c0_i32_0 = arith.constant 0 : i32
    %c0_i32_1 = arith.constant 0 : i32
    return %arg0, %c0_i32, %c0_i32_0 : i32, i32, i32
  }
}

</mosaic_0001>

<llo_original>
// kernel: conv_block_forward.1
$region0: #{conv_block_forward.1}
  #allocation0 [shape = 'u32[]', space=smem, size = 0x4, offset = 0x4, fixed_abs, tag = 'smem constant byte address 0x4 - core index']
  #allocation1 [shape = 'u32[144,128]{1,0:T(1,128)}', space=vmem, size = 0x12000, scoped, tag = 'internal scratch']
  %s0 = inlined_call_operand.vmem [shape: f32[2,4,256], index: 0, kind: input, shape index: {}]
  %s1 = inlined_call_operand.vmem [shape: f32[9,16,4], index: 1, kind: input, shape index: {}]
  %s2 = inlined_call_operand.vmem [shape: f32[16,3], index: 2, kind: input, shape index: {}]
  %s3 = inlined_call_operand.vmem [shape: f32[2,256], index: 3, kind: input, shape index: {}]
  %s4 = inlined_call_operand.vmem [shape: f32[2,16,256], index: 4, kind: output, shape index: {}]
  %s5 = sld [smem:[#allocation0]]
  $region49: #{conv_block_forward.1} parent=0
    _
  %s7 = ssub.s32 1, %s5
  %s8 = scalar_select 0, %s7, %s5
  loop: start=0, step=1, limit=4
  $region2: #{conv_block_forward.1} parent=0 // loop_pre_header
    _
  $region3: #{conv_block_forward.1} parent=0 // loop_header
    %s10 = sphi 0, %s14
    %p11 = scmp.ge.s32.totalorder %s10, 4
    %s20 = sphi 0, %s22
    %s23 = sphi 0, %s20
    %s24 = sphi 0, %s23
    %s40 = sphi 0, %s24
    %s44 = sphi 0, %s44
    %s46 = sphi 0, %s44
    %s47 = sphi 0, %s46
    %s61 = sphi 0, %s47
    %s65 = sphi 0, %s65
    %s67 = sphi 0, %s65
    %s68 = sphi 0, %s67
    %s82 = sphi 0, %s68
    %s86 = sphi 0, %s86
    %s88 = sphi 0, %s86
    %s89 = sphi 0, %s88
    %s103 = sphi 0, %s89
    %s109 = sphi 0, %s111
    %s112 = sphi 0, %s109
    %s113 = sphi 0, %s112
    %s129 = sphi 0, %s113
  $region4: #{conv_block_forward.1} parent=0 // loop_header_branch
    %13 = sbr.rel (%p11) target = $region8
  $region5: #{conv_block_forward.1} parent=0 // loop_body
    %s15 = ssub.s32 %s10, 1
    %s16 = ssub.s32 %s10, 2
    %s17 = sadd.s32 %s10, 1
    %s18 = ssub.s32 %s10, %s17
    %p19 = scmp.eq.s32.totalorder %s18, 0
    %s21 = sadd.s32 %s20, 1
    %s22 = scalar_select %p19, %s20, %s21
    %p25 = pneg %p19
    %p26 = scmp.eq.s32.totalorder %s10, 1
    %p27 = por %p25, %p26
    %p28 = scmp.ne.s32.totalorder %s20, %s23
    %p29 = scmp.eq.s32.totalorder %s10, 0
    %p30 = por %p28, %p29
    %p31 = scmp.ne.s32.totalorder %s20, %s23
    %p32 = scmp.eq.s32.totalorder %s15, 1
    %p33 = por %p31, %p32
    %p34 = scmp.ne.s32.totalorder %s23, %s24
    %p35 = scmp.eq.s32.totalorder %s15, 0
    %p36 = por %p34, %p35
    %p37 = scmp.ne.s32.totalorder %s23, %s24
    %p38 = scmp.eq.s32.totalorder %s16, 1
    %p39 = por %p37, %p38
    %p41 = scmp.ne.s32.totalorder %s24, %s40
    %p42 = scmp.eq.s32.totalorder %s16, 0
    %p43 = por %p41, %p42
    %s45 = sadd.s32 %s44, 1
    %p48 = scmp.eq.s32.totalorder %s10, 1
    %p49 = scmp.ne.s32.totalorder %s44, %s46
    %p50 = scmp.eq.s32.totalorder %s10, 0
    %p51 = por %p49, %p50
    %p52 = scmp.ne.s32.totalorder %s44, %s46
    %p53 = scmp.eq.s32.totalorder %s15, 1
    %p54 = por %p52, %p53
    %p55 = scmp.ne.s32.totalorder %s46, %s47
    %p56 = scmp.eq.s32.totalorder %s15, 0
    %p57 = por %p55, %p56
    %p58 = scmp.ne.s32.totalorder %s46, %s47
    %p59 = scmp.eq.s32.totalorder %s16, 1
    %p60 = por %p58, %p59
    %p62 = scmp.ne.s32.totalorder %s47, %s61
    %p63 = scmp.eq.s32.totalorder %s16, 0
    %p64 = por %p62, %p63
    %s66 = sadd.s32 %s65, 1
    %p69 = scmp.eq.s32.totalorder %s10, 1
    %p70 = scmp.ne.s32.totalorder %s65, %s67
    %p71 = scmp.eq.s32.totalorder %s10, 0
    %p72 = por %p70, %p71
    %p73 = scmp.ne.s32.totalorder %s65, %s67
    %p74 = scmp.eq.s32.totalorder %s15, 1
    %p75 = por %p73, %p74
    %p76 = scmp.ne.s32.totalorder %s67, %s68
    %p77 = scmp.eq.s32.totalorder %s15, 0
    %p78 = por %p76, %p77
    %p79 = scmp.ne.s32.totalorder %s67, %s68
    %p80 = scmp.eq.s32.totalorder %s16, 1
    %p81 = por %p79, %p80
    %p83 = scmp.ne.s32.totalorder %s68, %s82
    %p84 = scmp.eq.s32.totalorder %s16, 0
    %p85 = por %p83, %p84
    %s87 = sadd.s32 %s86, 1
    %p90 = scmp.eq.s32.totalorder %s10, 1
    %p91 = scmp.ne.s32.totalorder %s86, %s88
    %p92 = scmp.eq.s32.totalorder %s10, 0
    %p93 = por %p91, %p92
    %p94 = scmp.ne.s32.totalorder %s86, %s88
    %p95 = scmp.eq.s32.totalorder %s15, 1
    %p96 = por %p94, %p95
    %p97 = scmp.ne.s32.totalorder %s88, %s89
    %p98 = scmp.eq.s32.totalorder %s15, 0
    %p99 = por %p97, %p98
    %p100 = scmp.ne.s32.totalorder %s88, %s89
    %p101 = scmp.eq.s32.totalorder %s16, 1
    %p102 = por %p100, %p101
    %p104 = scmp.ne.s32.totalorder %s89, %s103
    %p105 = scmp.eq.s32.totalorder %s16, 0
    %p106 = por %p104, %p105
    %s107 = ssub.s32 %s10, %s17
    %p108 = scmp.eq.s32.totalorder %s107, 0
    %s110 = sadd.s32 %s109, 1
    %s111 = scalar_select %p108, %s109, %s110
    %p114 = pneg %p108
    %p115 = scmp.eq.s32.totalorder %s10, 1
    %p116 = por %p114, %p115
    %p117 = scmp.ne.s32.totalorder %s109, %s112
    %p118 = scmp.eq.s32.totalorder %s10, 0
    %p119 = por %p117, %p118
    %p120 = scmp.ne.s32.totalorder %s109, %s112
    %p121 = scmp.eq.s32.totalorder %s15, 1
    %p122 = por %p120, %p121
    %p123 = scmp.ne.s32.totalorder %s112, %s113
    %p124 = scmp.eq.s32.totalorder %s15, 0
    %p125 = por %p123, %p124
    %p126 = scmp.ne.s32.totalorder %s112, %s113
    %p127 = scmp.eq.s32.totalorder %s16, 1
    %p128 = por %p126, %p127
    %p130 = scmp.ne.s32.totalorder %s113, %s129
    %p131 = scmp.eq.s32.totalorder %s16, 0
    %p132 = por %p130, %p131
    %p133 = scmp.le.s32.totalorder 1, %s10
    %p134 = scmp.lt.s32.totalorder %s10, 3
    %p135 = pnand %p133, %p134
    %p136 = pneg %p135
    // Predicated region
    $region9: #{conv_block_forward.1} parent=5 // pred_check
      _
    $region10: #{conv_block_forward.1} parent=5 // pred_check_branch
      %138 = sbr.rel (%p135) target = $region12
    $region11: #{conv_block_forward.1} parent=5 // pred_region
      %s139 = ssub.s32 %s10, 1
      // Predicated region
      $region13: #{conv_block_forward.1} parent=11 // pred_check
        %p140 = pneg %p57
      $region14: #{conv_block_forward.1} parent=11 // pred_check_branch
        %142 = sbr.rel (%p140) target = $region16
      $region15: #{conv_block_forward.1} parent=11 // pred_region
        _
      $region16: #{conv_block_forward.1} parent=11 // pred_fallthru
        _
      // Predicated region
      $region17: #{conv_block_forward.1} parent=11 // pred_check
        %p143 = pneg %p78
      $region18: #{conv_block_forward.1} parent=11 // pred_check_branch
        %145 = sbr.rel (%p143) target = $region20
      $region19: #{conv_block_forward.1} parent=11 // pred_region
        _
      $region20: #{conv_block_forward.1} parent=11 // pred_fallthru
        _
      // Predicated region
      $region21: #{conv_block_forward.1} parent=11 // pred_check
        %p146 = pneg %p99
      $region22: #{conv_block_forward.1} parent=11 // pred_check_branch
        %148 = sbr.rel (%p146) target = $region24
      $region23: #{conv_block_forward.1} parent=11 // pred_region
        _
      $region24: #{conv_block_forward.1} parent=11 // pred_fallthru
        _
    $region12: #{conv_block_forward.1} parent=5 // pred_fallthru
      _
    %p149 = scmp.lt.s32.totalorder %s10, 2
    // Predicated region
    $region25: #{conv_block_forward.1} parent=5 // pred_check
      %p150 = pneg %p149
    $region26: #{conv_block_forward.1} parent=5 // pred_check_branch
      %152 = sbr.rel (%p150) target = $region28
    $region27: #{conv_block_forward.1} parent=5 // pred_region
      // Predicated region
      $region29: #{conv_block_forward.1} parent=27 // pred_check
        %p153 = pneg %p30
      $region30: #{conv_block_forward.1} parent=27 // pred_check_branch
        %155 = sbr.rel (%p153) target = $region32
      $region31: #{conv_block_forward.1} parent=27 // pred_region
        %p156 = scmp.lt.s32.totalorder %s10, 1
        %s157 = scalar_select %p156, %s10, 1
        %s158 = smul.addr %s157, 2
        %s159 = smul.addr %s158, 4
        %s160 = scalar_lea.vmem %s0, %s159
      $region32: #{conv_block_forward.1} parent=27 // pred_fallthru
        _
    $region28: #{conv_block_forward.1} parent=5 // pred_fallthru
      _
    %p161 = scmp.le.s32.totalorder 1, %s10
    %p162 = scmp.lt.s32.totalorder %s10, 3
    %p163 = pnand %p161, %p162
    %p164 = pneg %p163
    // Predicated region
    $region33: #{conv_block_forward.1} parent=5 // pred_check
      _
    $region34: #{conv_block_forward.1} parent=5 // pred_check_branch
      %166 = sbr.rel (%p163) target = $region36
    $region35: #{conv_block_forward.1} parent=5 // pred_region
      %s167 = ssub.s32 %s10, 1
      %p168 = scmp.lt.s32.totalorder %s15, 1
      %s169 = scalar_select %p168, %s15, 1
      %s170 = smul.addr %s169, 2
      %s171 = smul.addr %s170, 4
      %s172 = scalar_lea.vmem %s0, %s171
      %p173 = pneg %p36
      %p174 = pneg %p33
      %p175 = pneg %p57
      %p176 = pneg %p54
      %p177 = pneg %p78
      %p178 = pneg %p75
      %p179 = pneg %p99
      %p180 = pneg %p96
      %p181 = pneg %p125
      %p182 = pneg %p122
      %p183 = scmp.lt.s32.totalorder %s15, 1
      %s184 = scalar_select %p183, %s15, 1
      %s185 = smul.addr %s184, 4
      %s186 = smul.addr %s185, 8
      %s187 = scalar_lea.vmem %s4, %s186
      %p188 = scmp.lt.s32.totalorder %s15, 1
      %s189 = scalar_select %p188, %s15, 1
      %s190 = smul.addr %s189, 2
      %s191 = smul.addr %s190, 4
      %s192 = scalar_lea.vmem %s0, %s191
      %p193 = scmp.lt.s32.totalorder %s15, 1
      %s194 = scalar_select %p193, %s15, 1
      %s195 = smul.addr %s194, 4
      %s196 = smul.addr %s195, 8
      %s197 = scalar_lea.vmem %s4, %s196
      %v198 = vld [vmem:[%s192] sm:$0xff]
      %v199 = vld [vmem:[%s2] sm:$0xff]
      %v200 = vld [vmem:[%s2 + $0x8] sm:$0xff]
      %v201 = vlaneseq
      %v202 = vand.u32 %v201, 127
      %v203 = vadd.s32 %v202, 128
      %vm204 = vcmp.ge.s32.totalorder %v202, 16
      %vm205 = vcmp.ge.s32.totalorder %v203, 16
      %v206 = vsel %vm204, 1, 0
      %v207 = vsel %vm205, 1, 0
      %v208 = vcvt.s32.f32 %v206
      %v209 = vcvt.s32.f32 %v207
      %vm210 = vcmp.lt.s32.totalorder %v202, 240
      %vm211 = vcmp.lt.s32.totalorder %v203, 240
      %v212 = vsel %vm210, 1, 0
      %v213 = vsel %vm211, 1, 0
      %v214 = vcvt.s32.f32 %v212
      %v215 = vcvt.s32.f32 %v213
      %v216 = vld [vmem:[%s3] ss:$2 sm:$0x3]
      %s217 = scalar_lea.vmem %s3, 1
      %v218 = vld [vmem:[%s217] ss:$2 sm:$0x3]
      %v220 = vcombine.high %v198, %v198
      %222 = vrot.lane.b32.xlu0 %v198, 17
      %v223 = vpop.permute.xlu0 %222
      %224 = vrot.lane.b32.xlu0 %v220, 17
      %v225 = vpop.permute.xlu0 %224
      %vm226 = vcmp.lt.s32.totalorder %v202, 17
      %v227 = vsel %vm226, %v223, %v225
      %v228 = vsel %vm226, %v225, %v223
      %v230 = vlaneseq
      %v231 = vshrl.u32 %v230, 7
      %v232 = vsub.s32 0, %v231
      %v233 = vrot.slane %v216, %v232
      %v234 = vlaneseq
      %v235 = vshrl.u32 %v234, 7
      %v236 = vsub.s32 1, %v235
      %v237 = vrot.slane %v216, %v236
      %v240 = vmul.f32 %v208, %v233
      %v241 = vmul.f32 %v209, %v237
      %v242 = vlaneseq
      %v243 = vshrl.u32 %v242, 7
      %v244 = vsub.s32 0, %v243
      %v245 = vrot.slane %v240, %v244
      %v246 = vlaneseq
      %v247 = vshrl.u32 %v246, 7
      %v248 = vsub.s32 0, %v247
      %v249 = vrot.slane %v241, %v248
      %v250 = vmul.f32 %v228, %v245
      %v251 = vmul.f32 %v227, %v249
      %v252 = vld [vmem:[%s1] sm:$0xff]
      %v253 = vld [vmem:[%s1 + $0x8] sm:$0xff]
      %254 = vrot.lane.b32.xlu0 %v198, 16
      %v255 = vpop.permute.xlu0 %254
      %256 = vrot.lane.b32.xlu0 %v220, 16
      %v257 = vpop.permute.xlu0 %256
      %vm258 = vcmp.lt.s32.totalorder %v202, 16
      %v259 = vsel %vm258, %v255, %v257
      %v260 = vsel %vm258, %v257, %v255
      %v261 = vmul.f32 %v260, %v208
      %v262 = vmul.f32 %v259, %v209
      %s263 = scalar_lea.vmem %s1, 16
      %v264 = vld [vmem:[%s263] sm:$0xff]
      %v265 = vld [vmem:[%s263 + $0x8] sm:$0xff]
      %vm266 = vcmask 31744
      %v268 = vsel %vm266, %v264, 0
      %v271 = vsel %vm266, %v265, 0
      %vm273 = vcmask 1043456
      %v275 = vsel %vm273, %v261, 0
      %v278 = vsel %vm273, %v262, 0
      %280 = vmatprep.subr.mxu0 %v278
      %281 = vmatpush1.msra.mxu0 %v275
      %282 = vmatprep.subr.mxu0 0.0
      %283 = vmatpush1.msra.mxu0 0.0
      %284 = vmatprep.subr.mxu0 0.0
      %285 = vmatpush1.msra.mxu0 0.0
      %286 = vmatprep.subr.mxu0 0.0
      %287 = vmatpush1.msra.mxu0 0.0
      %288 = vmatprep.subr.mxu0 0.0
      %289 = vmatpush1.msra.mxu0 0.0
      %290 = vmatprep.subr.mxu0 0.0
      %291 = vmatpush1.msra.mxu0 0.0
      %292 = vmatprep.subr.mxu0 0.0
      %293 = vmatpush1.msra.mxu0 0.0
      %294 = vmatprep.subr.mxu0 0.0
      %295 = vmatpush1.msra.mxu0 0.0
      %296 = vmatprep.subr.mxu0 0.0
      %297 = vmatpush1.msra.mxu0 0.0
      %298 = vmatprep.subr.mxu0 0.0
      %299 = vmatpush1.msra.mxu0 0.0
      %300 = vmatprep.subr.mxu0 0.0
      %301 = vmatpush1.msra.mxu0 0.0
      %302 = vmatprep.subr.mxu0 0.0
      %303 = vmatpush1.msra.mxu0 0.0
      %304 = vmatprep.subr.mxu0 0.0
      %305 = vmatpush1.msra.mxu0 0.0
      %306 = vmatprep.subr.mxu0 0.0
      %307 = vmatpush1.msra.mxu0 0.0
      %308 = vmatprep.subr.mxu0 0.0
      %309 = vmatpush1.msra.mxu0 0.0
      %310 = vmatprep.subr.mxu0 0.0
      %311 = vmatpush1.msra.mxu0 0.0
      %312 = vmatprep.subr.mxu0 0.0
      %313 = vmatpush1.msra.mxu0 0.0
      %314 = vmatprep.subr.mxu0 0.0
      %315 = vmatpush1.msra.mxu0 0.0
      %316 = vmatprep.subr.mxu0 0.0
      %317 = vmatpush1.msra.mxu0 0.0
      %318 = vmatprep.subr.mxu0 0.0
      %319 = vmatpush1.msra.mxu0 0.0
      %320 = vmatprep.subr.mxu0 0.0
      %321 = vmatpush1.msra.mxu0 0.0
      %322 = vmatprep.subr.mxu0 0.0
      %323 = vmatpush1.msra.mxu0 0.0
      %324 = vmatprep.subr.mxu0 0.0
      %325 = vmatpush1.msra.mxu0 0.0
      %326 = vmatprep.subr.mxu0 0.0
      %327 = vmatpush1.msra.mxu0 0.0
      %328 = vmatprep.subr.mxu0 0.0
      %329 = vmatpush1.msra.mxu0 0.0
      %330 = vmatprep.subr.mxu0 0.0
      %331 = vmatpush1.msra.mxu0 0.0
      %332 = vmatprep.subr.mxu0 0.0
      %333 = vmatpush1.msra.mxu0 0.0
      %334 = vmatprep.subr.mxu0 0.0
      %335 = vmatpush1.msra.mxu0 0.0
      %336 = vmatprep.subr.mxu0 0.0
      %337 = vmatpush1.msra.mxu0 0.0
      %338 = vmatprep.subr.mxu0 0.0
      %339 = vmatpush1.msra.mxu0 0.0
      %340 = vmatprep.subr.mxu0 0.0
      %341 = vmatpush1.msra.mxu0 0.0
      %342 = vmatprep.subr.mxu0 0.0
      %343 = vmatpush1.msra.mxu0 0.0
      %344 = vmatprep.mubr.f32.mxu0 0.0
      %345 = vmatmul.mubr.f32.gmra.mrb[0].mxu0 %v268
      %v346 = vpop.f32.mrb[0].mxu0
      %v347 = vadd.f32 0.0, %v346
      %v348 = vpop.f32.mrb[0].mxu0
      %v349 = vadd.f32 0.0, %v348
      %350 = vmatprep.mubr.f32.mxu0 0.0
      %351 = vmatmul.mubr.f32.gmra.mrb[0].mxu0 %v271
      %v352 = vpop.f32.mrb[0].mxu0
      %v353 = vadd.f32 0.0, %v352
      %v354 = vpop.f32.mrb[0].mxu0
      %v355 = vadd.f32 0.0, %v354
      %356 = vdwg.mxu0
      %v358 = vsel %vm266, %v252, 0
      %v361 = vsel %vm266, %v253, 0
      %v364 = vsel %vm273, %v250, 0
      %v367 = vsel %vm273, %v251, 0
      %369 = vmatprep.subr.mxu0 %v367
      %370 = vmatpush1.msra.mxu0 %v364
      %371 = vmatprep.subr.mxu0 0.0
      %372 = vmatpush1.msra.mxu0 0.0
      %373 = vmatprep.subr.mxu0 0.0
      %374 = vmatpush1.msra.mxu0 0.0
      %375 = vmatprep.subr.mxu0 0.0
      %376 = vmatpush1.msra.mxu0 0.0
      %377 = vmatprep.subr.mxu0 0.0
      %378 = vmatpush1.msra.mxu0 0.0
      %379 = vmatprep.subr.mxu0 0.0
      %380 = vmatpush1.msra.mxu0 0.0
      %381 = vmatprep.subr.mxu0 0.0
      %382 = vmatpush1.msra.mxu0 0.0
      %383 = vmatprep.subr.mxu0 0.0
      %384 = vmatpush1.msra.mxu0 0.0
      %385 = vmatprep.subr.mxu0 0.0
      %386 = vmatpush1.msra.mxu0 0.0
      %387 = vmatprep.subr.mxu0 0.0
      %388 = vmatpush1.msra.mxu0 0.0
      %389 = vmatprep.subr.mxu0 0.0
      %390 = vmatpush1.msra.mxu0 0.0
      %391 = vmatprep.subr.mxu0 0.0
      %392 = vmatpush1.msra.mxu0 0.0
      %393 = vmatprep.subr.mxu0 0.0
      %394 = vmatpush1.msra.mxu0 0.0
      %395 = vmatprep.subr.mxu0 0.0
      %396 = vmatpush1.msra.mxu0 0.0
      %397 = vmatprep.subr.mxu0 0.0
      %398 = vmatpush1.msra.mxu0 0.0
      %399 = vmatprep.subr.mxu0 0.0
      %400 = vmatpush1.msra.mxu0 0.0
      %401 = vmatprep.subr.mxu0 0.0
      %402 = vmatpush1.msra.mxu0 0.0
      %403 = vmatprep.subr.mxu0 0.0
      %404 = vmatpush1.msra.mxu0 0.0
      %405 = vmatprep.subr.mxu0 0.0
      %406 = vmatpush1.msra.mxu0 0.0
      %407 = vmatprep.subr.mxu0 0.0
      %408 = vmatpush1.msra.mxu0 0.0
      %409 = vmatprep.subr.mxu0 0.0
      %410 = vmatpush1.msra.mxu0 0.0
      %411 = vmatprep.subr.mxu0 0.0
      %412 = vmatpush1.msra.mxu0 0.0
      %413 = vmatprep.subr.mxu0 0.0
      %414 = vmatpush1.msra.mxu0 0.0
      %415 = vmatprep.subr.mxu0 0.0
      %416 = vmatpush1.msra.mxu0 0.0
      %417 = vmatprep.subr.mxu0 0.0
      %418 = vmatpush1.msra.mxu0 0.0
      %419 = vmatprep.subr.mxu0 0.0
      %420 = vmatpush1.msra.mxu0 0.0
      %421 = vmatprep.subr.mxu0 0.0
      %422 = vmatpush1.msra.mxu0 0.0
      %423 = vmatprep.subr.mxu0 0.0
      %424 = vmatpush1.msra.mxu0 0.0
      %425 = vmatprep.subr.mxu0 0.0
      %426 = vmatpush1.msra.mxu0 0.0
      %427 = vmatprep.subr.mxu0 0.0
      %428 = vmatpush1.msra.mxu0 0.0
      %429 = vmatprep.subr.mxu0 0.0
      %430 = vmatpush1.msra.mxu0 0.0
      %431 = vmatprep.subr.mxu0 0.0
      %432 = vmatpush1.msra.mxu0 0.0
      %433 = vmatprep.mubr.f32.mxu0 0.0
      %434 = vmatmul.mubr.f32.gmra.mrb[0].mxu0 %v358
      %v435 = vpop.f32.mrb[0].mxu0
      %v436 = vadd.f32 %v347, %v435
      %v437 = vpop.f32.mrb[0].mxu0
      %v438 = vadd.f32 %v349, %v437
      %439 = vmatprep.mubr.f32.mxu0 0.0
      %440 = vmatmul.mubr.f32.gmra.mrb[0].mxu0 %v361
      %v441 = vpop.f32.mrb[0].mxu0
      %v442 = vadd.f32 %v353, %v441
      %v443 = vpop.f32.mrb[0].mxu0
      %v444 = vadd.f32 %v355, %v443
      %445 = vdwg.mxu0
      %446 = vrot.lane.b32.xlu0 %v198, 15
      %v447 = vpop.permute.xlu0 %446
      %448 = vrot.lane.b32.xlu0 %v220, 15
      %v449 = vpop.permute.xlu0 %448
      %vm450 = vcmp.lt.s32.totalorder %v202, 15
      %v451 = vsel %vm450, %v447, %v449
      %v452 = vsel %vm450, %v449, %v447
      %v454 = vlaneseq
      %v455 = vshrl.u32 %v454, 7
      %v456 = vsub.s32 0, %v455
      %v457 = vrot.slane %v218, %v456
      %v458 = vlaneseq
      %v459 = vshrl.u32 %v458, 7
      %v460 = vsub.s32 1, %v459
      %v461 = vrot.slane %v218, %v460
      %v464 = vmul.f32 %v208, %v457
      %v465 = vmul.f32 %v209, %v461
      %v466 = vlaneseq
      %v467 = vshrl.u32 %v466, 7
      %v468 = vsub.s32 0, %v467
      %v469 = vrot.slane %v464, %v468
      %v470 = vlaneseq
      %v471 = vshrl.u32 %v470, 7
      %v472 = vsub.s32 0, %v471
      %v473 = vrot.slane %v465, %v472
      %v474 = vmul.f32 %v452, %v469
      %v475 = vmul.f32 %v451, %v473
      %s476 = scalar_lea.vmem %s1, 32
      %v477 = vld [vmem:[%s476] sm:$0xff]
      %v478 = vld [vmem:[%s476 + $0x8] sm:$0xff]
      %v480 = vsel %vm266, %v477, 0
      %v483 = vsel %vm266, %v478, 0
      %v486 = vsel %vm273, %v474, 0
      %v489 = vsel %vm273, %v475, 0
      %491 = vmatprep.subr.mxu0 %v489
      %492 = vmatpush1.msra.mxu0 %v486
      %493 = vmatprep.subr.mxu0 0.0
      %494 = vmatpush1.msra.mxu0 0.0
      %495 = vmatprep.subr.mxu0 0.0
      %496 = vmatpush1.msra.mxu0 0.0
      %497 = vmatprep.subr.mxu0 0.0
      %498 = vmatpush1.msra.mxu0 0.0
      %499 = vmatprep.subr.mxu0 0.0
      %500 = vmatpush1.msra.mxu0 0.0
      %501 = vmatprep.subr.mxu0 0.0
      %502 = vmatpush1.msra.mxu0 0.0
      %503 = vmatprep.subr.mxu0 0.0
      %504 = vmatpush1.msra.mxu0 0.0
      %505 = vmatprep.subr.mxu0 0.0
      %506 = vmatpush1.msra.mxu0 0.0
      %507 = vmatprep.subr.mxu0 0.0
      %508 = vmatpush1.msra.mxu0 0.0
      %509 = vmatprep.subr.mxu0 0.0
      %510 = vmatpush1.msra.mxu0 0.0
      %511 = vmatprep.subr.mxu0 0.0
      %512 = vmatpush1.msra.mxu0 0.0
      %513 = vmatprep.subr.mxu0 0.0
      %514 = vmatpush1.msra.mxu0 0.0
      %515 = vmatprep.subr.mxu0 0.0
      %516 = vmatpush1.msra.mxu0 0.0
      %517 = vmatprep.subr.mxu0 0.0
      %518 = vmatpush1.msra.mxu0 0.0
      %519 = vmatprep.subr.mxu0 0.0
      %520 = vmatpush1.msra.mxu0 0.0
      %521 = vmatprep.subr.mxu0 0.0
      %522 = vmatpush1.msra.mxu0 0.0
      %523 = vmatprep.subr.mxu0 0.0
      %524 = vmatpush1.msra.mxu0 0.0
      %525 = vmatprep.subr.mxu0 0.0
      %526 = vmatpush1.msra.mxu0 0.0
      %527 = vmatprep.subr.mxu0 0.0
      %528 = vmatpush1.msra.mxu0 0.0
      %529 = vmatprep.subr.mxu0 0.0
      %530 = vmatpush1.msra.mxu0 0.0
      %531 = vmatprep.subr.mxu0 0.0
      %532 = vmatpush1.msra.mxu0 0.0
      %533 = vmatprep.subr.mxu0 0.0
      %534 = vmatpush1.msra.mxu0 0.0
      %535 = vmatprep.subr.mxu0 0.0
      %536 = vmatpush1.msra.mxu0 0.0
      %537 = vmatprep.subr.mxu0 0.0
      %538 = vmatpush1.msra.mxu0 0.0
      %539 = vmatprep.subr.mxu0 0.0
      %540 = vmatpush1.msra.mxu0 0.0
      %541 = vmatprep.subr.mxu0 0.0
      %542 = vmatpush1.msra.mxu0 0.0
      %543 = vmatprep.subr.mxu0 0.0
      %544 = vmatpush1.msra.mxu0 0.0
      %545 = vmatprep.subr.mxu0 0.0
      %546 = vmatpush1.msra.mxu0 0.0
      %547 = vmatprep.subr.mxu0 0.0
      %548 = vmatpush1.msra.mxu0 0.0
      %549 = vmatprep.subr.mxu0 0.0
      %550 = vmatpush1.msra.mxu0 0.0
      %551 = vmatprep.subr.mxu0 0.0
      %552 = vmatpush1.msra.mxu0 0.0
      %553 = vmatprep.subr.mxu0 0.0
      %554 = vmatpush1.msra.mxu0 0.0
      %555 = vmatprep.mubr.f32.mxu0 0.0
      %556 = vmatmul.mubr.f32.gmra.mrb[0].mxu0 %v480
      %v557 = vpop.f32.mrb[0].mxu0
      %v558 = vadd.f32 0.0, %v557
      %v559 = vpop.f32.mrb[0].mxu0
      %v560 = vadd.f32 0.0, %v559
      %561 = vmatprep.mubr.f32.mxu0 0.0
      %562 = vmatmul.mubr.f32.gmra.mrb[0].mxu0 %v483
      %v563 = vpop.f32.mrb[0].mxu0
      %v564 = vadd.f32 0.0, %v563
      %v565 = vpop.f32.mrb[0].mxu0
      %v566 = vadd.f32 0.0, %v565
      %567 = vdwg.mxu0
      %v568 = vadd.f32 %v436, %v558
      %v569 = vadd.f32 %v438, %v560
      %v570 = vadd.f32 %v442, %v564
      %v571 = vadd.f32 %v444, %v566
      %572 = vrot.lane.b32.xlu0 %v198, 1
      %v573 = vpop.permute.xlu0 %572
      %574 = vrot.lane.b32.xlu0 %v220, 1
      %v575 = vpop.permute.xlu0 %574
      %vm576 = vcmp.lt.s32.totalorder %v202, 1
      %v577 = vsel %vm576, %v573, %v575
      %v578 = vsel %vm576, %v575, %v573
      %v579 = vmul.f32 %v578, %v233
      %v580 = vmul.f32 %v577, %v237
      %s581 = scalar_lea.vmem %s1, 48
      %v582 = vld [vmem:[%s581] sm:$0xff]
      %v583 = vld [vmem:[%s581 + $0x8] sm:$0xff]
      %v585 = vsel %vm266, %v582, 0
      %v588 = vsel %vm266, %v583, 0
      %v591 = vsel %vm273, %v579, 0
      %v594 = vsel %vm273, %v580, 0
      %596 = vmatprep.subr.mxu0 %v594
      %597 = vmatpush1.msra.mxu0 %v591
      %598 = vmatprep.subr.mxu0 0.0
      %599 = vmatpush1.msra.mxu0 0.0
      %600 = vmatprep.subr.mxu0 0.0
      %601 = vmatpush1.msra.mxu0 0.0
      %602 = vmatprep.subr.mxu0 0.0
      %603 = vmatpush1.msra.mxu0 0.0
      %604 = vmatprep.subr.mxu0 0.0
      %605 = vmatpush1.msra.mxu0 0.0
      %606 = vmatprep.subr.mxu0 0.0
      %607 = vmatpush1.msra.mxu0 0.0
      %608 = vmatprep.subr.mxu0 0.0
      %609 = vmatpush1.msra.mxu0 0.0
      %610 = vmatprep.subr.mxu0 0.0
      %611 = vmatpush1.msra.mxu0 0.0
      %612 = vmatprep.subr.mxu0 0.0
      %613 = vmatpush1.msra.mxu0 0.0
      %614 = vmatprep.subr.mxu0 0.0
      %615 = vmatpush1.msra.mxu0 0.0
      %616 = vmatprep.subr.mxu0 0.0
      %617 = vmatpush1.msra.mxu0 0.0
      %618 = vmatprep.subr.mxu0 0.0
      %619 = vmatpush1.msra.mxu0 0.0
      %620 = vmatprep.subr.mxu0 0.0
      %621 = vmatpush1.msra.mxu0 0.0
      %622 = vmatprep.subr.mxu0 0.0
      %623 = vmatpush1.msra.mxu0 0.0
      %624 = vmatprep.subr.mxu0 0.0
      %625 = vmatpush1.msra.mxu0 0.0
      %626 = vmatprep.subr.mxu0 0.0
      %627 = vmatpush1.msra.mxu0 0.0
      %628 = vmatprep.subr.mxu0 0.0
      %629 = vmatpush1.msra.mxu0 0.0
      %630 = vmatprep.subr.mxu0 0.0
      %631 = vmatpush1.msra.mxu0 0.0
      %632 = vmatprep.subr.mxu0 0.0
      %633 = vmatpush1.msra.mxu0 0.0
      %634 = vmatprep.subr.mxu0 0.0
      %635 = vmatpush1.msra.mxu0 0.0
      %636 = vmatprep.subr.mxu0 0.0
      %637 = vmatpush1.msra.mxu0 0.0
      %638 = vmatprep.subr.mxu0 0.0
      %639 = vmatpush1.msra.mxu0 0.0
      %640 = vmatprep.subr.mxu0 0.0
      %641 = vmatpush1.msra.mxu0 0.0
      %642 = vmatprep.subr.mxu0 0.0
      %643 = vmatpush1.msra.mxu0 0.0
      %644 = vmatprep.subr.mxu0 0.0
      %645 = vmatpush1.msra.mxu0 0.0
      %646 = vmatprep.subr.mxu0 0.0
      %647 = vmatpush1.msra.mxu0 0.0
      %648 = vmatprep.subr.mxu0 0.0
      %649 = vmatpush1.msra.mxu0 0.0
      %650 = vmatprep.subr.mxu0 0.0
      %651 = vmatpush1.msra.mxu0 0.0
      %652 = vmatprep.subr.mxu0 0.0
      %653 = vmatpush1.msra.mxu0 0.0
      %654 = vmatprep.subr.mxu0 0.0
      %655 = vmatpush1.msra.mxu0 0.0
      %656 = vmatprep.subr.mxu0 0.0
      %657 = vmatpush1.msra.mxu0 0.0
      %658 = vmatprep.subr.mxu0 0.0
      %659 = vmatpush1.msra.mxu0 0.0
      %660 = vmatprep.mubr.f32.mxu0 0.0
      %661 = vmatmul.mubr.f32.gmra.mrb[0].mxu0 %v585
      %v662 = vpop.f32.mrb[0].mxu0
      %v663 = vadd.f32 0.0, %v662
      %v664 = vpop.f32.mrb[0].mxu0
      %v665 = vadd.f32 0.0, %v664
      %666 = vmatprep.mubr.f32.mxu0 0.0
      %667 = vmatmul.mubr.f32.gmra.mrb[0].mxu0 %v588
      %v668 = vpop.f32.mrb[0].mxu0
      %v669 = vadd.f32 0.0, %v668
      %v670 = vpop.f32.mrb[0].mxu0
      %v671 = vadd.f32 0.0, %v670
      %672 = vdwg.mxu0
      %v673 = vadd.f32 %v568, %v663
      %v674 = vadd.f32 %v569, %v665
      %v675 = vadd.f32 %v570, %v669
      %v676 = vadd.f32 %v571, %v671
      %s677 = scalar_lea.vmem %s1, 64
      %v678 = vld [vmem:[%s677] sm:$0xff]
      %v679 = vld [vmem:[%s677 + $0x8] sm:$0xff]
      %v681 = vsel %vm266, %v678, 0
      %v684 = vsel %vm266, %v679, 0
      %v686 = vsel %vm273, %v198, 0
      %v688 = vsel %vm273, %v220, 0
      %690 = vmatprep.subr.mxu0 %v688
      %691 = vmatpush1.msra.mxu0 %v686
      %692 = vmatprep.subr.mxu0 0.0
      %693 = vmatpush1.msra.mxu0 0.0
      %694 = vmatprep.subr.mxu0 0.0
      %695 = vmatpush1.msra.mxu0 0.0
      %696 = vmatprep.subr.mxu0 0.0
      %697 = vmatpush1.msra.mxu0 0.0
      %698 = vmatprep.subr.mxu0 0.0
      %699 = vmatpush1.msra.mxu0 0.0
      %700 = vmatprep.subr.mxu0 0.0
      %701 = vmatpush1.msra.mxu0 0.0
      %702 = vmatprep.subr.mxu0 0.0
      %703 = vmatpush1.msra.mxu0 0.0
      %704 = vmatprep.subr.mxu0 0.0
      %705 = vmatpush1.msra.mxu0 0.0
      %706 = vmatprep.subr.mxu0 0.0
      %707 = vmatpush1.msra.mxu0 0.0
      %708 = vmatprep.subr.mxu0 0.0
      %709 = vmatpush1.msra.mxu0 0.0
      %710 = vmatprep.subr.mxu0 0.0
      %711 = vmatpush1.msra.mxu0 0.0
      %712 = vmatprep.subr.mxu0 0.0
      %713 = vmatpush1.msra.mxu0 0.0
      %714 = vmatprep.subr.mxu0 0.0
      %715 = vmatpush1.msra.mxu0 0.0
      %716 = vmatprep.subr.mxu0 0.0
      %717 = vmatpush1.msra.mxu0 0.0
      %718 = vmatprep.subr.mxu0 0.0
      %719 = vmatpush1.msra.mxu0 0.0
      %720 = vmatprep.subr.mxu0 0.0
      %721 = vmatpush1.msra.mxu0 0.0
      %722 = vmatprep.subr.mxu0 0.0
      %723 = vmatpush1.msra.mxu0 0.0
      %724 = vmatprep.subr.mxu0 0.0
      %725 = vmatpush1.msra.mxu0 0.0
      %726 = vmatprep.subr.mxu0 0.0
      %727 = vmatpush1.msra.mxu0 0.0
      %728 = vmatprep.subr.mxu0 0.0
      %729 = vmatpush1.msra.mxu0 0.0
      %730 = vmatprep.subr.mxu0 0.0
      %731 = vmatpush1.msra.mxu0 0.0
      %732 = vmatprep.subr.mxu0 0.0
      %733 = vmatpush1.msra.mxu0 0.0
      %734 = vmatprep.subr.mxu0 0.0
      %735 = vmatpush1.msra.mxu0 0.0
      %736 = vmatprep.subr.mxu0 0.0
      %737 = vmatpush1.msra.mxu0 0.0
      %738 = vmatprep.subr.mxu0 0.0
      %739 = vmatpush1.msra.mxu0 0.0
      %740 = vmatprep.subr.mxu0 0.0
      %741 = vmatpush1.msra.mxu0 0.0
      %742 = vmatprep.subr.mxu0 0.0
      %743 = vmatpush1.msra.mxu0 0.0
      %744 = vmatprep.subr.mxu0 0.0
      %745 = vmatpush1.msra.mxu0 0.0
      %746 = vmatprep.subr.mxu0 0.0
      %747 = vmatpush1.msra.mxu0 0.0
      %748 = vmatprep.subr.mxu0 0.0
      %749 = vmatpush1.msra.mxu0 0.0
      %750 = vmatprep.subr.mxu0 0.0
      %751 = vmatpush1.msra.mxu0 0.0
      %752 = vmatprep.subr.mxu0 0.0
      %753 = vmatpush1.msra.mxu0 0.0
      %754 = vmatprep.mubr.f32.mxu0 0.0
      %755 = vmatmul.mubr.f32.gmra.mrb[0].mxu0 %v681
      %v756 = vpop.f32.mrb[0].mxu0
      %v757 = vadd.f32 0.0, %v756
      %v758 = vpop.f32.mrb[0].mxu0
      %v759 = vadd.f32 0.0, %v758
      %760 = vmatprep.mubr.f32.mxu0 0.0
      %761 = vmatmul.mubr.f32.gmra.mrb[0].mxu0 %v684
      %v762 = vpop.f32.mrb[0].mxu0
      %v763 = vadd.f32 0.0, %v762
      %v764 = vpop.f32.mrb[0].mxu0
      %v765 = vadd.f32 0.0, %v764
      %766 = vdwg.mxu0
      %v767 = vadd.f32 %v673, %v757
      %v768 = vadd.f32 %v674, %v759
      %v769 = vadd.f32 %v675, %v763
      %v770 = vadd.f32 %v676, %v765
      %771 = vrot.lane.b32.xlu0 %v198, 127
      %v772 = vpop.permute.xlu0 %771
      %773 = vrot.lane.b32.xlu0 %v220, 127
      %v774 = vpop.permute.xlu0 %773
      %vm775 = vcmp.lt.s32.totalorder %v202, 127
      %v776 = vsel %vm775, %v772, %v774
      %v777 = vsel %vm775, %v774, %v772
      %v778 = vmul.f32 %v776, %v457
      %v779 = vmul.f32 %v777, %v461
      %s780 = scalar_lea.vmem %s1, 80
      %v781 = vld [vmem:[%s780] sm:$0xff]
      %v782 = vld [vmem:[%s780 + $0x8] sm:$0xff]
      %v784 = vsel %vm266, %v781, 0
      %v787 = vsel %vm266, %v782, 0
      %v790 = vsel %vm273, %v778, 0
      %v793 = vsel %vm273, %v779, 0
      %795 = vmatprep.subr.mxu0 %v793
      %796 = vmatpush1.msra.mxu0 %v790
      %797 = vmatprep.subr.mxu0 0.0
      %798 = vmatpush1.msra.mxu0 0.0
      %799 = vmatprep.subr.mxu0 0.0
      %800 = vmatpush1.msra.mxu0 0.0
      %801 = vmatprep.subr.mxu0 0.0
      %802 = vmatpush1.msra.mxu0 0.0
      %803 = vmatprep.subr.mxu0 0.0
      %804 = vmatpush1.msra.mxu0 0.0
      %805 = vmatprep.subr.mxu0 0.0
      %806 = vmatpush1.msra.mxu0 0.0
      %807 = vmatprep.subr.mxu0 0.0
      %808 = vmatpush1.msra.mxu0 0.0
      %809 = vmatprep.subr.mxu0 0.0
      %810 = vmatpush1.msra.mxu0 0.0
      %811 = vmatprep.subr.mxu0 0.0
      %812 = vmatpush1.msra.mxu0 0.0
      %813 = vmatprep.subr.mxu0 0.0
      %814 = vmatpush1.msra.mxu0 0.0
      %815 = vmatprep.subr.mxu0 0.0
      %816 = vmatpush1.msra.mxu0 0.0
      %817 = vmatprep.subr.mxu0 0.0
      %818 = vmatpush1.msra.mxu0 0.0
      %819 = vmatprep.subr.mxu0 0.0
      %820 = vmatpush1.msra.mxu0 0.0
      %821 = vmatprep.subr.mxu0 0.0
      %822 = vmatpush1.msra.mxu0 0.0
      %823 = vmatprep.subr.mxu0 0.0
      %824 = vmatpush1.msra.mxu0 0.0
      %825 = vmatprep.subr.mxu0 0.0
      %826 = vmatpush1.msra.mxu0 0.0
      %827 = vmatprep.subr.mxu0 0.0
      %828 = vmatpush1.msra.mxu0 0.0
      %829 = vmatprep.subr.mxu0 0.0
      %830 = vmatpush1.msra.mxu0 0.0
      %831 = vmatprep.subr.mxu0 0.0
      %832 = vmatpush1.msra.mxu0 0.0
      %833 = vmatprep.subr.mxu0 0.0
      %834 = vmatpush1.msra.mxu0 0.0
      %835 = vmatprep.subr.mxu0 0.0
      %836 = vmatpush1.msra.mxu0 0.0
      %837 = vmatprep.subr.mxu0 0.0
      %838 = vmatpush1.msra.mxu0 0.0
      %839 = vmatprep.subr.mxu0 0.0
      %840 = vmatpush1.msra.mxu0 0.0
      %841 = vmatprep.subr.mxu0 0.0
      %842 = vmatpush1.msra.mxu0 0.0
      %843 = vmatprep.subr.mxu0 0.0
      %844 = vmatpush1.msra.mxu0 0.0
      %845 = vmatprep.subr.mxu0 0.0
      %846 = vmatpush1.msra.mxu0 0.0
      %847 = vmatprep.subr.mxu0 0.0
      %848 = vmatpush1.msra.mxu0 0.0
      %849 = vmatprep.subr.mxu0 0.0
      %850 = vmatpush1.msra.mxu0 0.0
      %851 = vmatprep.subr.mxu0 0.0
      %852 = vmatpush1.msra.mxu0 0.0
      %853 = vmatprep.subr.mxu0 0.0
      %854 = vmatpush1.msra.mxu0 0.0
      %855 = vmatprep.subr.mxu0 0.0
      %856 = vmatpush1.msra.mxu0 0.0
      %857 = vmatprep.subr.mxu0 0.0
      %858 = vmatpush1.msra.mxu0 0.0
      %859 = vmatprep.mubr.f32.mxu0 0.0
      %860 = vmatmul.mubr.f32.gmra.mrb[0].mxu0 %v784
      %v861 = vpop.f32.mrb[0].mxu0
      %v862 = vadd.f32 0.0, %v861
      %v863 = vpop.f32.mrb[0].mxu0
      %v864 = vadd.f32 0.0, %v863
      %865 = vmatprep.mubr.f32.mxu0 0.0
      %866 = vmatmul.mubr.f32.gmra.mrb[0].mxu0 %v787
      %v867 = vpop.f32.mrb[0].mxu0
      %v868 = vadd.f32 0.0, %v867
      %v869 = vpop.f32.mrb[0].mxu0
      %v870 = vadd.f32 0.0, %v869
      %871 = vdwg.mxu0
      %v872 = vadd.f32 %v767, %v862
      %v873 = vadd.f32 %v768, %v864
      %v874 = vadd.f32 %v769, %v868
      %v875 = vadd.f32 %v770, %v870
      %876 = vrot.lane.b32.xlu0 %v198, 113
      %v877 = vpop.permute.xlu0 %876
      %878 = vrot.lane.b32.xlu0 %v220, 113
      %v879 = vpop.permute.xlu0 %878
      %vm880 = vcmp.lt.s32.totalorder %v202, 113
      %v881 = vsel %vm880, %v877, %v879
      %v882 = vsel %vm880, %v879, %v877
      %v883 = vmul.f32 %v214, %v233
      %v884 = vmul.f32 %v215, %v237
      %v885 = vlaneseq
      %v886 = vshrl.u32 %v885, 7
      %v887 = vsub.s32 0, %v886
      %v888 = vrot.slane %v883, %v887
      %v889 = vlaneseq
      %v890 = vshrl.u32 %v889, 7
      %v891 = vsub.s32 0, %v890
      %v892 = vrot.slane %v884, %v891
      %v893 = vmul.f32 %v881, %v888
      %v894 = vmul.f32 %v882, %v892
      %s895 = scalar_lea.vmem %s1, 96
      %v896 = vld [vmem:[%s895] sm:$0xff]
      %v897 = vld [vmem:[%s895 + $0x8] sm:$0xff]
      %v899 = vsel %vm266, %v896, 0
      %v902 = vsel %vm266, %v897, 0
      %v905 = vsel %vm273, %v893, 0
      %v908 = vsel %vm273, %v894, 0
      %910 = vmatprep.subr.mxu0 %v908
      %911 = vmatpush1.msra.mxu0 %v905
      %912 = vmatprep.subr.mxu0 0.0
      %913 = vmatpush1.msra.mxu0 0.0
      %914 = vmatprep.subr.mxu0 0.0
      %915 = vmatpush1.msra.mxu0 0.0
      %916 = vmatprep.subr.mxu0 0.0
      %917 = vmatpush1.msra.mxu0 0.0
      %918 = vmatprep.subr.mxu0 0.0
      %919 = vmatpush1.msra.mxu0 0.0
      %920 = vmatprep.subr.mxu0 0.0
      %921 = vmatpush1.msra.mxu0 0.0
      %922 = vmatprep.subr.mxu0 0.0
      %923 = vmatpush1.msra.mxu0 0.0
      %924 = vmatprep.subr.mxu0 0.0
      %925 = vmatpush1.msra.mxu0 0.0
      %926 = vmatprep.subr.mxu0 0.0
      %927 = vmatpush1.msra.mxu0 0.0
      %928 = vmatprep.subr.mxu0 0.0
      %929 = vmatpush1.msra.mxu0 0.0
      %930 = vmatprep.subr.mxu0 0.0
      %931 = vmatpush1.msra.mxu0 0.0
      %932 = vmatprep.subr.mxu0 0.0
      %933 = vmatpush1.msra.mxu0 0.0
      %934 = vmatprep.subr.mxu0 0.0
      %935 = vmatpush1.msra.mxu0 0.0
      %936 = vmatprep.subr.mxu0 0.0
      %937 = vmatpush1.msra.mxu0 0.0
      %938 = vmatprep.subr.mxu0 0.0
      %939 = vmatpush1.msra.mxu0 0.0
      %940 = vmatprep.subr.mxu0 0.0
      %941 = vmatpush1.msra.mxu0 0.0
      %942 = vmatprep.subr.mxu0 0.0
      %943 = vmatpush1.msra.mxu0 0.0
      %944 = vmatprep.subr.mxu0 0.0
      %945 = vmatpush1.msra.mxu0 0.0
      %946 = vmatprep.subr.mxu0 0.0
      %947 = vmatpush1.msra.mxu0 0.0
      %948 = vmatprep.subr.mxu0 0.0
      %949 = vmatpush1.msra.mxu0 0.0
      %950 = vmatprep.subr.mxu0 0.0
      %951 = vmatpush1.msra.mxu0 0.0
      %952 = vmatprep.subr.mxu0 0.0
      %953 = vmatpush1.msra.mxu0 0.0
      %954 = vmatprep.subr.mxu0 0.0
      %955 = vmatpush1.msra.mxu0 0.0
      %956 = vmatprep.subr.mxu0 0.0
      %957 = vmatpush1.msra.mxu0 0.0
      %958 = vmatprep.subr.mxu0 0.0
      %959 = vmatpush1.msra.mxu0 0.0
      %960 = vmatprep.subr.mxu0 0.0
      %961 = vmatpush1.msra.mxu0 0.0
      %962 = vmatprep.subr.mxu0 0.0
      %963 = vmatpush1.msra.mxu0 0.0
      %964 = vmatprep.subr.mxu0 0.0
      %965 = vmatpush1.msra.mxu0 0.0
      %966 = vmatprep.subr.mxu0 0.0
      %967 = vmatpush1.msra.mxu0 0.0
      %968 = vmatprep.subr.mxu0 0.0
      %969 = vmatpush1.msra.mxu0 0.0
      %970 = vmatprep.subr.mxu0 0.0
      %971 = vmatpush1.msra.mxu0 0.0
      %972 = vmatprep.subr.mxu0 0.0
      %973 = vmatpush1.msra.mxu0 0.0
      %974 = vmatprep.mubr.f32.mxu0 0.0
      %975 = vmatmul.mubr.f32.gmra.mrb[0].mxu0 %v899
      %v976 = vpop.f32.mrb[0].mxu0
      %v977 = vadd.f32 0.0, %v976
      %v978 = vpop.f32.mrb[0].mxu0
      %v979 = vadd.f32 0.0, %v978
      %980 = vmatprep.mubr.f32.mxu0 0.0
      %981 = vmatmul.mubr.f32.gmra.mrb[0].mxu0 %v902
      %v982 = vpop.f32.mrb[0].mxu0
      %v983 = vadd.f32 0.0, %v982
      %v984 = vpop.f32.mrb[0].mxu0
      %v985 = vadd.f32 0.0, %v984
      %986 = vdwg.mxu0
      %v987 = vadd.f32 %v872, %v977
      %v988 = vadd.f32 %v873, %v979
      %v989 = vadd.f32 %v874, %v983
      %v990 = vadd.f32 %v875, %v985
      %991 = vrot.lane.b32.xlu0 %v198, 112
      %v992 = vpop.permute.xlu0 %991
      %993 = vrot.lane.b32.xlu0 %v220, 112
      %v994 = vpop.permute.xlu0 %993
      %vm995 = vcmp.lt.s32.totalorder %v202, 112
      %v996 = vsel %vm995, %v992, %v994
      %v997 = vsel %vm995, %v994, %v992
      %v998 = vmul.f32 %v996, %v214
      %v999 = vmul.f32 %v997, %v215
      %s1000 = scalar_lea.vmem %s1, 112
      %v1001 = vld [vmem:[%s1000] sm:$0xff]
      %v1002 = vld [vmem:[%s1000 + $0x8] sm:$0xff]
      %v1004 = vsel %vm266, %v1001, 0
      %v1007 = vsel %vm266, %v1002, 0
      %v1010 = vsel %vm273, %v998, 0
      %v1013 = vsel %vm273, %v999, 0
      %1015 = vmatprep.subr.mxu0 %v1013
      %1016 = vmatpush1.msra.mxu0 %v1010
      %1017 = vmatprep.subr.mxu0 0.0
      %1018 = vmatpush1.msra.mxu0 0.0
      %1019 = vmatprep.subr.mxu0 0.0
      %1020 = vmatpush1.msra.mxu0 0.0
      %1021 = vmatprep.subr.mxu0 0.0
      %1022 = vmatpush1.msra.mxu0 0.0
      %1023 = vmatprep.subr.mxu0 0.0
      %1024 = vmatpush1.msra.mxu0 0.0
      %1025 = vmatprep.subr.mxu0 0.0
      %1026 = vmatpush1.msra.mxu0 0.0
      %1027 = vmatprep.subr.mxu0 0.0
      %1028 = vmatpush1.msra.mxu0 0.0
      %1029 = vmatprep.subr.mxu0 0.0
      %1030 = vmatpush1.msra.mxu0 0.0
      %1031 = vmatprep.subr.mxu0 0.0
      %1032 = vmatpush1.msra.mxu0 0.0
      %1033 = vmatprep.subr.mxu0 0.0
      %1034 = vmatpush1.msra.mxu0 0.0
      %1035 = vmatprep.subr.mxu0 0.0
      %1036 = vmatpush1.msra.mxu0 0.0
      %1037 = vmatprep.subr.mxu0 0.0
      %1038 = vmatpush1.msra.mxu0 0.0
      %1039 = vmatprep.subr.mxu0 0.0
      %1040 = vmatpush1.msra.mxu0 0.0
      %1041 = vmatprep.subr.mxu0 0.0
      %1042 = vmatpush1.msra.mxu0 0.0
      %1043 = vmatprep.subr.mxu0 0.0
      %1044 = vmatpush1.msra.mxu0 0.0
      %1045 = vmatprep.subr.mxu0 0.0
      %1046 = vmatpush1.msra.mxu0 0.0
      %1047 = vmatprep.subr.mxu0 0.0
      %1048 = vmatpush1.msra.mxu0 0.0
      %1049 = vmatprep.subr.mxu0 0.0
      %1050 = vmatpush1.msra.mxu0 0.0
      %1051 = vmatprep.subr.mxu0 0.0
      %1052 = vmatpush1.msra.mxu0 0.0
      %1053 = vmatprep.subr.mxu0 0.0
      %1054 = vmatpush1.msra.mxu0 0.0
      %1055 = vmatprep.subr.mxu0 0.0
      %1056 = vmatpush1.msra.mxu0 0.0
      %1057 = vmatprep.subr.mxu0 0.0
      %1058 = vmatpush1.msra.mxu0 0.0
      %1059 = vmatprep.subr.mxu0 0.0
      %1060 = vmatpush1.msra.mxu0 0.0
      %1061 = vmatprep.subr.mxu0 0.0
      %1062 = vmatpush1.msra.mxu0 0.0
      %1063 = vmatprep.subr.mxu0 0.0
      %1064 = vmatpush1.msra.mxu0 0.0
      %1065 = vmatprep.subr.mxu0 0.0
      %1066 = vmatpush1.msra.mxu0 0.0
      %1067 = vmatprep.subr.mxu0 0.0
      %1068 = vmatpush1.msra.mxu0 0.0
      %1069 = vmatprep.subr.mxu0 0.0
      %1070 = vmatpush1.msra.mxu0 0.0
      %1071 = vmatprep.subr.mxu0 0.0
      %1072 = vmatpush1.msra.mxu0 0.0
      %1073 = vmatprep.subr.mxu0 0.0
      %1074 = vmatpush1.msra.mxu0 0.0
      %1075 = vmatprep.subr.mxu0 0.0
      %1076 = vmatpush1.msra.mxu0 0.0
      %1077 = vmatprep.subr.mxu0 0.0
      %1078 = vmatpush1.msra.mxu0 0.0
      %1079 = vmatprep.mubr.f32.mxu0 0.0
      %1080 = vmatmul.mubr.f32.gmra.mrb[0].mxu0 %v1004
      %v1081 = vpop.f32.mrb[0].mxu0
      %v1082 = vadd.f32 0.0, %v1081
      %v1083 = vpop.f32.mrb[0].mxu0
      %v1084 = vadd.f32 0.0, %v1083
      %1085 = vmatprep.mubr.f32.mxu0 0.0
      %1086 = vmatmul.mubr.f32.gmra.mrb[0].mxu0 %v1007
      %v1087 = vpop.f32.mrb[0].mxu0
      %v1088 = vadd.f32 0.0, %v1087
      %v1089 = vpop.f32.mrb[0].mxu0
      %v1090 = vadd.f32 0.0, %v1089
      %1091 = vdwg.mxu0
      %v1092 = vadd.f32 %v987, %v1082
      %v1093 = vadd.f32 %v988, %v1084
      %v1094 = vadd.f32 %v989, %v1088
      %v1095 = vadd.f32 %v990, %v1090
      %1096 = vrot.lane.b32.xlu0 %v198, 111
      %v1097 = vpop.permute.xlu0 %1096
      %1098 = vrot.lane.b32.xlu0 %v220, 111
      %v1099 = vpop.permute.xlu0 %1098
      %vm1100 = vcmp.lt.s32.totalorder %v202, 111
      %v1101 = vsel %vm1100, %v1097, %v1099
      %v1102 = vsel %vm1100, %v1099, %v1097
      %v1103 = vmul.f32 %v214, %v457
      %v1104 = vmul.f32 %v215, %v461
      %v1105 = vlaneseq
      %v1106 = vshrl.u32 %v1105, 7
      %v1107 = vsub.s32 0, %v1106
      %v1108 = vrot.slane %v1103, %v1107
      %v1109 = vlaneseq
      %v1110 = vshrl.u32 %v1109, 7
      %v1111 = vsub.s32 0, %v1110
      %v1112 = vrot.slane %v1104, %v1111
      %v1113 = vmul.f32 %v1101, %v1108
      %v1114 = vmul.f32 %v1102, %v1112
      %s1115 = scalar_lea.vmem %s1, 128
      %v1116 = vld [vmem:[%s1115] sm:$0xff]
      %v1117 = vld [vmem:[%s1115 + $0x8] sm:$0xff]
      %v1119 = vsel %vm266, %v1116, 0
      %v1122 = vsel %vm266, %v1117, 0
      %v1125 = vsel %vm273, %v1113, 0
      %v1128 = vsel %vm273, %v1114, 0
      %1130 = vmatprep.subr.mxu0 %v1128
      %1131 = vmatpush1.msra.mxu0 %v1125
      %1132 = vmatprep.subr.mxu0 0.0
      %1133 = vmatpush1.msra.mxu0 0.0
      %1134 = vmatprep.subr.mxu0 0.0
      %1135 = vmatpush1.msra.mxu0 0.0
      %1136 = vmatprep.subr.mxu0 0.0
      %1137 = vmatpush1.msra.mxu0 0.0
      %1138 = vmatprep.subr.mxu0 0.0
      %1139 = vmatpush1.msra.mxu0 0.0
      %1140 = vmatprep.subr.mxu0 0.0
      %1141 = vmatpush1.msra.mxu0 0.0
      %1142 = vmatprep.subr.mxu0 0.0
      %1143 = vmatpush1.msra.mxu0 0.0
      %1144 = vmatprep.subr.mxu0 0.0
      %1145 = vmatpush1.msra.mxu0 0.0
      %1146 = vmatprep.subr.mxu0 0.0
      %1147 = vmatpush1.msra.mxu0 0.0
      %1148 = vmatprep.subr.mxu0 0.0
      %1149 = vmatpush1.msra.mxu0 0.0
      %1150 = vmatprep.subr.mxu0 0.0
      %1151 = vmatpush1.msra.mxu0 0.0
      %1152 = vmatprep.subr.mxu0 0.0
      %1153 = vmatpush1.msra.mxu0 0.0
      %1154 = vmatprep.subr.mxu0 0.0
      %1155 = vmatpush1.msra.mxu0 0.0
      %1156 = vmatprep.subr.mxu0 0.0
      %1157 = vmatpush1.msra.mxu0 0.0
      %1158 = vmatprep.subr.mxu0 0.0
      %1159 = vmatpush1.msra.mxu0 0.0
      %1160 = vmatprep.subr.mxu0 0.0
      %1161 = vmatpush1.msra.mxu0 0.0
      %1162 = vmatprep.subr.mxu0 0.0
      %1163 = vmatpush1.msra.mxu0 0.0
      %1164 = vmatprep.subr.mxu0 0.0
      %1165 = vmatpush1.msra.mxu0 0.0
      %1166 = vmatprep.subr.mxu0 0.0
      %1167 = vmatpush1.msra.mxu0 0.0
      %1168 = vmatprep.subr.mxu0 0.0
      %1169 = vmatpush1.msra.mxu0 0.0
      %1170 = vmatprep.subr.mxu0 0.0
      %1171 = vmatpush1.msra.mxu0 0.0
      %1172 = vmatprep.subr.mxu0 0.0
      %1173 = vmatpush1.msra.mxu0 0.0
      %1174 = vmatprep.subr.mxu0 0.0
      %1175 = vmatpush1.msra.mxu0 0.0
      %1176 = vmatprep.subr.mxu0 0.0
      %1177 = vmatpush1.msra.mxu0 0.0
      %1178 = vmatprep.subr.mxu0 0.0
      %1179 = vmatpush1.msra.mxu0 0.0
      %1180 = vmatprep.subr.mxu0 0.0
      %1181 = vmatpush1.msra.mxu0 0.0
      %1182 = vmatprep.subr.mxu0 0.0
      %1183 = vmatpush1.msra.mxu0 0.0
      %1184 = vmatprep.subr.mxu0 0.0
      %1185 = vmatpush1.msra.mxu0 0.0
      %1186 = vmatprep.subr.mxu0 0.0
      %1187 = vmatpush1.msra.mxu0 0.0
      %1188 = vmatprep.subr.mxu0 0.0
      %1189 = vmatpush1.msra.mxu0 0.0
      %1190 = vmatprep.subr.mxu0 0.0
      %1191 = vmatpush1.msra.mxu0 0.0
      %1192 = vmatprep.subr.mxu0 0.0
      %1193 = vmatpush1.msra.mxu0 0.0
      %1194 = vmatprep.mubr.f32.mxu0 0.0
      %1195 = vmatmul.mubr.f32.gmra.mrb[0].mxu0 %v1119
      %v1196 = vpop.f32.mrb[0].mxu0
      %v1197 = vadd.f32 0.0, %v1196
      %v1198 = vpop.f32.mrb[0].mxu0
      %v1199 = vadd.f32 0.0, %v1198
      %1200 = vmatprep.mubr.f32.mxu0 0.0
      %1201 = vmatmul.mubr.f32.gmra.mrb[0].mxu0 %v1122
      %v1202 = vpop.f32.mrb[0].mxu0
      %v1203 = vadd.f32 0.0, %v1202
      %v1204 = vpop.f32.mrb[0].mxu0
      %v1205 = vadd.f32 0.0, %v1204
      %1206 = vdwg.mxu0
      %v1207 = vadd.f32 %v1092, %v1197
      %v1208 = vadd.f32 %v1093, %v1199
      %v1209 = vadd.f32 %v1094, %v1203
      %v1210 = vadd.f32 %v1095, %v1205
      %1212 = vset.pattern.permute.xlu0 0
      %1213 = vperm.xlu0 %1212, %v199
      %v1214 = vpop.permute.xlu0 %1213
      %1217 = vset.pattern.permute.xlu0 0
      %1218 = vperm.xlu0 %1217, %v200
      %v1219 = vpop.permute.xlu0 %1218
      %v1221 = vadd.f32 %v1207, %v1214
      %v1222 = vadd.f32 %v1208, %v1214
      %v1223 = vadd.f32 %v1209, %v1219
      %v1224 = vadd.f32 %v1210, %v1219
      %v1225 = vadd.f32 %v1221, %v1222
      %1226 = vadd.xlane.f32.xlu0 %v1225
      %v1227 = vpop.xlane.xlu0 %1226
      %v1228 = vadd.f32 %v1223, %v1224
      %1229 = vadd.xlane.f32.xlu0 %v1228
      %v1230 = vpop.xlane.xlu0 %1229
      %v1231 = vmul.f32 %v1221, %v1221
      %v1232 = vmul.f32 %v1222, %v1222
      %v1233 = vmul.f32 %v1223, %v1223
      %v1234 = vmul.f32 %v1224, %v1224
      %v1235 = vadd.f32 %v1231, %v1232
      %1236 = vadd.xlane.f32.xlu0 %v1235
      %v1237 = vpop.xlane.xlu0 %1236
      %v1238 = vadd.f32 %v1233, %v1234
      %1239 = vadd.xlane.f32.xlu0 %v1238
      %v1240 = vpop.xlane.xlu0 %1239
      %v1244 = vunpack.c.l.s4 269488144
      %v1245 = vunpack.c.0.s8 %v1244
      %v1246 = vlaneseq
      %v1247 = vshrl.u32 %v1246, 7
      %v1248 = vsub.s32 %v1245, %v1247
      %v1249 = vrot.slane %v1227, %v1248
      %v1251 = vunpack.c.l.s4 842150450
      %v1252 = vunpack.c.0.s8 %v1251
      %v1253 = vlaneseq
      %v1254 = vshrl.u32 %v1253, 7
      %v1255 = vsub.s32 %v1252, %v1254
      %v1256 = vrot.slane %v1227, %v1255
      %v1258 = vunpack.c.l.s4 1414812756
      %v1259 = vunpack.c.0.s8 %v1258
      %v1260 = vlaneseq
      %v1261 = vshrl.u32 %v1260, 7
      %v1262 = vsub.s32 %v1259, %v1261
      %v1263 = vrot.slane %v1227, %v1262
      %v1265 = vunpack.c.l.s4 1987475062
      %v1266 = vunpack.c.0.s8 %v1265
      %v1267 = vlaneseq
      %v1268 = vshrl.u32 %v1267, 7
      %v1269 = vsub.s32 %v1266, %v1268
      %v1270 = vrot.slane %v1227, %v1269
      %v1272 = vunpack.c.l.s4 269488144
      %v1273 = vunpack.c.0.s8 %v1272
      %v1274 = vlaneseq
      %v1275 = vshrl.u32 %v1274, 7
      %v1276 = vsub.s32 %v1273, %v1275
      %v1277 = vrot.slane %v1230, %v1276
      %v1279 = vunpack.c.l.s4 842150450
      %v1280 = vunpack.c.0.s8 %v1279
      %v1281 = vlaneseq
      %v1282 = vshrl.u32 %v1281, 7
      %v1283 = vsub.s32 %v1280, %v1282
      %v1284 = vrot.slane %v1230, %v1283
      %v1286 = vunpack.c.l.s4 1414812756
      %v1287 = vunpack.c.0.s8 %v1286
      %v1288 = vlaneseq
      %v1289 = vshrl.u32 %v1288, 7
      %v1290 = vsub.s32 %v1287, %v1289
      %v1291 = vrot.slane %v1230, %v1290
      %v1293 = vunpack.c.l.s4 1987475062
      %v1294 = vunpack.c.0.s8 %v1293
      %v1295 = vlaneseq
      %v1296 = vshrl.u32 %v1295, 7
      %v1297 = vsub.s32 %v1294, %v1296
      %v1298 = vrot.slane %v1230, %v1297
      %v1310 = vunpack.c.l.s4 269488144
      %v1311 = vunpack.c.0.s8 %v1310
      %v1312 = vlaneseq
      %v1313 = vshrl.u32 %v1312, 7
      %v1314 = vsub.s32 %v1311, %v1313
      %v1315 = vrot.slane %v1237, %v1314
      %v1317 = vunpack.c.l.s4 842150450
      %v1318 = vunpack.c.0.s8 %v1317
      %v1319 = vlaneseq
      %v1320 = vshrl.u32 %v1319, 7
      %v1321 = vsub.s32 %v1318, %v1320
      %v1322 = vrot.slane %v1237, %v1321
      %v1324 = vunpack.c.l.s4 1414812756
      %v1325 = vunpack.c.0.s8 %v1324
      %v1326 = vlaneseq
      %v1327 = vshrl.u32 %v1326, 7
      %v1328 = vsub.s32 %v1325, %v1327
      %v1329 = vrot.slane %v1237, %v1328
      %v1331 = vunpack.c.l.s4 1987475062
      %v1332 = vunpack.c.0.s8 %v1331
      %v1333 = vlaneseq
      %v1334 = vshrl.u32 %v1333, 7
      %v1335 = vsub.s32 %v1332, %v1334
      %v1336 = vrot.slane %v1237, %v1335
      %v1338 = vunpack.c.l.s4 269488144
      %v1339 = vunpack.c.0.s8 %v1338
      %v1340 = vlaneseq
      %v1341 = vshrl.u32 %v1340, 7
      %v1342 = vsub.s32 %v1339, %v1341
      %v1343 = vrot.slane %v1240, %v1342
      %v1345 = vunpack.c.l.s4 842150450
      %v1346 = vunpack.c.0.s8 %v1345
      %v1347 = vlaneseq
      %v1348 = vshrl.u32 %v1347, 7
      %v1349 = vsub.s32 %v1346, %v1348
      %v1350 = vrot.slane %v1240, %v1349
      %v1352 = vunpack.c.l.s4 1414812756
      %v1353 = vunpack.c.0.s8 %v1352
      %v1354 = vlaneseq
      %v1355 = vshrl.u32 %v1354, 7
      %v1356 = vsub.s32 %v1353, %v1355
      %v1357 = vrot.slane %v1240, %v1356
      %v1359 = vunpack.c.l.s4 1987475062
      %v1360 = vunpack.c.0.s8 %v1359
      %v1361 = vlaneseq
      %v1362 = vshrl.u32 %v1361, 7
      %v1363 = vsub.s32 %v1360, %v1362
      %v1364 = vrot.slane %v1240, %v1363
      %vm1373 = vcmask 1041408
      %v1374 = vsel %vm1373, %v1249, 0.0
      %v1375 = vrot.slane %v1374, 4
      %v1376 = vadd.f32 %v1374, %v1375
      %v1377 = vrot.slane %v1376, 2
      %v1378 = vadd.f32 %v1376, %v1377
      %v1379 = vrot.slane %v1378, 1
      %v1380 = vadd.f32 %v1378, %v1379
      %v1381 = vsel %vm1373, %v1256, 0.0
      %v1382 = vrot.slane %v1381, 4
      %v1383 = vadd.f32 %v1381, %v1382
      %v1384 = vrot.slane %v1383, 2
      %v1385 = vadd.f32 %v1383, %v1384
      %v1386 = vrot.slane %v1385, 1
      %v1387 = vadd.f32 %v1385, %v1386
      %v1388 = vsel %vm1373, %v1263, 0.0
      %v1389 = vrot.slane %v1388, 4
      %v1390 = vadd.f32 %v1388, %v1389
      %v1391 = vrot.slane %v1390, 2
      %v1392 = vadd.f32 %v1390, %v1391
      %v1393 = vrot.slane %v1392, 1
      %v1394 = vadd.f32 %v1392, %v1393
      %v1395 = vsel %vm1373, %v1270, 0.0
      %v1396 = vrot.slane %v1395, 4
      %v1397 = vadd.f32 %v1395, %v1396
      %v1398 = vrot.slane %v1397, 2
      %v1399 = vadd.f32 %v1397, %v1398
      %v1400 = vrot.slane %v1399, 1
      %v1401 = vadd.f32 %v1399, %v1400
      %v1402 = vsel %vm1373, %v1277, 0.0
      %v1403 = vrot.slane %v1402, 4
      %v1404 = vadd.f32 %v1402, %v1403
      %v1405 = vrot.slane %v1404, 2
      %v1406 = vadd.f32 %v1404, %v1405
      %v1407 = vrot.slane %v1406, 1
      %v1408 = vadd.f32 %v1406, %v1407
      %v1409 = vsel %vm1373, %v1284, 0.0
      %v1410 = vrot.slane %v1409, 4
      %v1411 = vadd.f32 %v1409, %v1410
      %v1412 = vrot.slane %v1411, 2
      %v1413 = vadd.f32 %v1411, %v1412
      %v1414 = vrot.slane %v1413, 1
      %v1415 = vadd.f32 %v1413, %v1414
      %v1416 = vsel %vm1373, %v1291, 0.0
      %v1417 = vrot.slane %v1416, 4
      %v1418 = vadd.f32 %v1416, %v1417
      %v1419 = vrot.slane %v1418, 2
      %v1420 = vadd.f32 %v1418, %v1419
      %v1421 = vrot.slane %v1420, 1
      %v1422 = vadd.f32 %v1420, %v1421
      %v1423 = vsel %vm1373, %v1298, 0.0
      %v1424 = vrot.slane %v1423, 4
      %v1425 = vadd.f32 %v1423, %v1424
      %v1426 = vrot.slane %v1425, 2
      %v1427 = vadd.f32 %v1425, %v1426
      %v1428 = vrot.slane %v1427, 1
      %v1429 = vadd.f32 %v1427, %v1428
      %v1430 = vmul.f32 %v1380, 0.001953125
      %v1431 = vmul.f32 %v1387, 0.001953125
      %v1432 = vmul.f32 %v1394, 0.001953125
      %v1433 = vmul.f32 %v1401, 0.001953125
      %v1434 = vmul.f32 %v1408, 0.001953125
      %v1435 = vmul.f32 %v1415, 0.001953125
      %v1436 = vmul.f32 %v1422, 0.001953125
      %v1437 = vmul.f32 %v1429, 0.001953125
      %v1438 = vsel %vm1373, %v1315, 0.0
      %v1439 = vrot.slane %v1438, 4
      %v1440 = vadd.f32 %v1438, %v1439
      %v1441 = vrot.slane %v1440, 2
      %v1442 = vadd.f32 %v1440, %v1441
      %v1443 = vrot.slane %v1442, 1
      %v1444 = vadd.f32 %v1442, %v1443
      %v1445 = vsel %vm1373, %v1322, 0.0
      %v1446 = vrot.slane %v1445, 4
      %v1447 = vadd.f32 %v1445, %v1446
      %v1448 = vrot.slane %v1447, 2
      %v1449 = vadd.f32 %v1447, %v1448
      %v1450 = vrot.slane %v1449, 1
      %v1451 = vadd.f32 %v1449, %v1450
      %v1452 = vsel %vm1373, %v1329, 0.0
      %v1453 = vrot.slane %v1452, 4
      %v1454 = vadd.f32 %v1452, %v1453
      %v1455 = vrot.slane %v1454, 2
      %v1456 = vadd.f32 %v1454, %v1455
      %v1457 = vrot.slane %v1456, 1
      %v1458 = vadd.f32 %v1456, %v1457
      %v1459 = vsel %vm1373, %v1336, 0.0
      %v1460 = vrot.slane %v1459, 4
      %v1461 = vadd.f32 %v1459, %v1460
      %v1462 = vrot.slane %v1461, 2
      %v1463 = vadd.f32 %v1461, %v1462
      %v1464 = vrot.slane %v1463, 1
      %v1465 = vadd.f32 %v1463, %v1464
      %v1466 = vsel %vm1373, %v1343, 0.0
      %v1467 = vrot.slane %v1466, 4
      %v1468 = vadd.f32 %v1466, %v1467
      %v1469 = vrot.slane %v1468, 2
      %v1470 = vadd.f32 %v1468, %v1469
      %v1471 = vrot.slane %v1470, 1
      %v1472 = vadd.f32 %v1470, %v1471
      %v1473 = vsel %vm1373, %v1350, 0.0
      %v1474 = vrot.slane %v1473, 4
      %v1475 = vadd.f32 %v1473, %v1474
      %v1476 = vrot.slane %v1475, 2
      %v1477 = vadd.f32 %v1475, %v1476
      %v1478 = vrot.slane %v1477, 1
      %v1479 = vadd.f32 %v1477, %v1478
      %v1480 = vsel %vm1373, %v1357, 0.0
      %v1481 = vrot.slane %v1480, 4
      %v1482 = vadd.f32 %v1480, %v1481
      %v1483 = vrot.slane %v1482, 2
      %v1484 = vadd.f32 %v1482, %v1483
      %v1485 = vrot.slane %v1484, 1
      %v1486 = vadd.f32 %v1484, %v1485
      %v1487 = vsel %vm1373, %v1364, 0.0
      %v1488 = vrot.slane %v1487, 4
      %v1489 = vadd.f32 %v1487, %v1488
      %v1490 = vrot.slane %v1489, 2
      %v1491 = vadd.f32 %v1489, %v1490
      %v1492 = vrot.slane %v1491, 1
      %v1493 = vadd.f32 %v1491, %v1492
      %v1494 = vmul.f32 %v1444, 0.001953125
      %v1495 = vmul.f32 %v1451, 0.001953125
      %v1496 = vmul.f32 %v1458, 0.001953125
      %v1497 = vmul.f32 %v1465, 0.001953125
      %v1498 = vmul.f32 %v1472, 0.001953125
      %v1499 = vmul.f32 %v1479, 0.001953125
      %v1500 = vmul.f32 %v1486, 0.001953125
      %v1501 = vmul.f32 %v1493, 0.001953125
      %v1502 = vmul.f32 %v1430, %v1430
      %v1503 = vmul.f32 %v1431, %v1431
      %v1504 = vmul.f32 %v1432, %v1432
      %v1505 = vmul.f32 %v1433, %v1433
      %v1506 = vmul.f32 %v1434, %v1434
      %v1507 = vmul.f32 %v1435, %v1435
      %v1508 = vmul.f32 %v1436, %v1436
      %v1509 = vmul.f32 %v1437, %v1437
      %v1510 = vsub.f32 %v1494, %v1502
      %v1511 = vsub.f32 %v1495, %v1503
      %v1512 = vsub.f32 %v1496, %v1504
      %v1513 = vsub.f32 %v1497, %v1505
      %v1514 = vsub.f32 %v1498, %v1506
      %v1515 = vsub.f32 %v1499, %v1507
      %v1516 = vsub.f32 %v1500, %v1508
      %v1517 = vsub.f32 %v1501, %v1509
      %v1518 = vmax.f32 %v1510, 0.0
      %v1519 = vmax.f32 %v1511, 0.0
      %v1520 = vmax.f32 %v1512, 0.0
      %v1521 = vmax.f32 %v1513, 0.0
      %v1522 = vmax.f32 %v1514, 0.0
      %v1523 = vmax.f32 %v1515, 0.0
      %v1524 = vmax.f32 %v1516, 0.0
      %v1525 = vmax.f32 %v1517, 0.0
      %v1526 = vadd.f32 %v1518, 1e-05
      %v1527 = vadd.f32 %v1519, 1e-05
      %v1528 = vadd.f32 %v1520, 1e-05
      %v1529 = vadd.f32 %v1521, 1e-05
      %v1530 = vadd.f32 %v1522, 1e-05
      %v1531 = vadd.f32 %v1523, 1e-05
      %v1532 = vadd.f32 %v1524, 1e-05
      %v1533 = vadd.f32 %v1525, 1e-05
      %v1534 = vrsqrt.pop %v1526
      %v1535 = vrsqrt.pop %v1527
      %v1536 = vrsqrt.pop %v1528
      %v1537 = vrsqrt.pop %v1529
      %v1538 = vrsqrt.pop %v1530
      %v1539 = vrsqrt.pop %v1531
      %v1540 = vrsqrt.pop %v1532
      %v1541 = vrsqrt.pop %v1533
      %v1550 = vcombine.low %v1534, %v1535
      %v1551 = vcombine.low %v1536, %v1537
      %v1553 = vunpack.c.l.s4 1983009808
      %v1554 = vunpack.c.0.s8 %v1553
      %v1555 = vlaneseq
      %v1556 = vshrl.u32 %v1555, 7
      %v1557 = vsub.s32 %v1554, %v1556
      %v1558 = vrot.slane %v1550, %v1557
      %v1560 = vunpack.c.l.s4 1983009808
      %v1561 = vunpack.c.0.s8 %v1560
      %v1562 = vlaneseq
      %v1563 = vshrl.u32 %v1562, 7
      %v1564 = vsub.s32 %v1561, %v1563
      %v1565 = vrot.slane %v1551, %v1564
      %v1566 = vcombine.low %v1558, %v1565
      %v1567 = vcombine.low %v1538, %v1539
      %v1568 = vcombine.low %v1540, %v1541
      %v1570 = vunpack.c.l.s4 1983009808
      %v1571 = vunpack.c.0.s8 %v1570
      %v1572 = vlaneseq
      %v1573 = vshrl.u32 %v1572, 7
      %v1574 = vsub.s32 %v1571, %v1573
      %v1575 = vrot.slane %v1567, %v1574
      %v1577 = vunpack.c.l.s4 1983009808
      %v1578 = vunpack.c.0.s8 %v1577
      %v1579 = vlaneseq
      %v1580 = vshrl.u32 %v1579, 7
      %v1581 = vsub.s32 %v1578, %v1580
      %v1582 = vrot.slane %v1568, %v1581
      %v1583 = vcombine.low %v1575, %v1582
      %1584 = vrot.lane.b32.xlu0 %v1566, 1
      %v1585 = vpop.permute.xlu0 %1584
      %1586 = vrot.lane.b32.xlu0 %v1583, 1
      %v1587 = vpop.permute.xlu0 %1586
      %v1590 = vmul.f32 %v199, %v1585
      %v1591 = vmul.f32 %v200, %v1587
      %v1594 = vcombine.high %v1590, %v1590
      %v1596 = vunpack.c.l.s4 1983009808
      %v1597 = vunpack.c.0.s8 %v1596
      %v1598 = vlaneseq
      %v1599 = vshrl.u32 %v1598, 7
      %v1600 = vsub.s32 %v1597, %v1599
      %v1601 = vrot.slane %v1590, %v1600
      %v1603 = vunpack.c.l.s4 1983009808
      %v1604 = vunpack.c.0.s8 %v1603
      %v1605 = vlaneseq
      %v1606 = vshrl.u32 %v1605, 7
      %v1607 = vsub.s32 %v1604, %v1606
      %v1608 = vrot.slane %v1594, %v1607
      %v1609 = vcombine.high %v1601, %v1601
      %v1610 = vcombine.high %v1608, %v1608
      %v1611 = vcombine.high %v1591, %v1591
      %v1613 = vunpack.c.l.s4 1983009808
      %v1614 = vunpack.c.0.s8 %v1613
      %v1615 = vlaneseq
      %v1616 = vshrl.u32 %v1615, 7
      %v1617 = vsub.s32 %v1614, %v1616
      %v1618 = vrot.slane %v1591, %v1617
      %v1620 = vunpack.c.l.s4 1983009808
      %v1621 = vunpack.c.0.s8 %v1620
      %v1622 = vlaneseq
      %v1623 = vshrl.u32 %v1622, 7
      %v1624 = vsub.s32 %v1621, %v1623
      %v1625 = vrot.slane %v1611, %v1624
      %v1626 = vcombine.high %v1618, %v1618
      %v1627 = vcombine.high %v1625, %v1625
      %1628 = vrot.lane.b32.xlu0 %v1601, 127
      %v1629 = vpop.permute.xlu0 %1628
      %1630 = vrot.lane.b32.xlu0 %v1609, 127
      %v1631 = vpop.permute.xlu0 %1630
      %1632 = vrot.lane.b32.xlu0 %v1608, 127
      %v1633 = vpop.permute.xlu0 %1632
      %1634 = vrot.lane.b32.xlu0 %v1610, 127
      %v1635 = vpop.permute.xlu0 %1634
      %1636 = vrot.lane.b32.xlu0 %v1618, 127
      %v1637 = vpop.permute.xlu0 %1636
      %1638 = vrot.lane.b32.xlu0 %v1626, 127
      %v1639 = vpop.permute.xlu0 %1638
      %1640 = vrot.lane.b32.xlu0 %v1625, 127
      %v1641 = vpop.permute.xlu0 %1640
      %1642 = vrot.lane.b32.xlu0 %v1627, 127
      %v1643 = vpop.permute.xlu0 %1642
      %v1652 = vmul.f32 %v1430, %v1629
      %v1653 = vmul.f32 %v1431, %v1631
      %v1654 = vmul.f32 %v1432, %v1633
      %v1655 = vmul.f32 %v1433, %v1635
      %v1656 = vmul.f32 %v1434, %v1637
      %v1657 = vmul.f32 %v1435, %v1639
      %v1658 = vmul.f32 %v1436, %v1641
      %v1659 = vmul.f32 %v1437, %v1643
      %v1668 = vcombine.low %v1652, %v1653
      %v1669 = vcombine.low %v1654, %v1655
      %v1671 = vunpack.c.l.s4 1983009808
      %v1672 = vunpack.c.0.s8 %v1671
      %v1673 = vlaneseq
      %v1674 = vshrl.u32 %v1673, 7
      %v1675 = vsub.s32 %v1672, %v1674
      %v1676 = vrot.slane %v1668, %v1675
      %v1678 = vunpack.c.l.s4 1983009808
      %v1679 = vunpack.c.0.s8 %v1678
      %v1680 = vlaneseq
      %v1681 = vshrl.u32 %v1680, 7
      %v1682 = vsub.s32 %v1679, %v1681
      %v1683 = vrot.slane %v1669, %v1682
      %v1684 = vcombine.low %v1676, %v1683
      %v1685 = vcombine.low %v1656, %v1657
      %v1686 = vcombine.low %v1658, %v1659
      %v1688 = vunpack.c.l.s4 1983009808
      %v1689 = vunpack.c.0.s8 %v1688
      %v1690 = vlaneseq
      %v1691 = vshrl.u32 %v1690, 7
      %v1692 = vsub.s32 %v1689, %v1691
      %v1693 = vrot.slane %v1685, %v1692
      %v1695 = vunpack.c.l.s4 1983009808
      %v1696 = vunpack.c.0.s8 %v1695
      %v1697 = vlaneseq
      %v1698 = vshrl.u32 %v1697, 7
      %v1699 = vsub.s32 %v1696, %v1698
      %v1700 = vrot.slane %v1686, %v1699
      %v1701 = vcombine.low %v1693, %v1700
      %1702 = vrot.lane.b32.xlu0 %v1684, 2
      %v1703 = vpop.permute.xlu0 %1702
      %1704 = vrot.lane.b32.xlu0 %v1701, 2
      %v1705 = vpop.permute.xlu0 %1704
      %v1708 = vsub.f32 %v199, %v1703
      %v1709 = vsub.f32 %v200, %v1705
      %1710 = vset.pattern.permute.xlu0 1
      %1711 = vperm.xlu0 %1710, %v1590
      %v1712 = vpop.permute.xlu0 %1711
      %1714 = vset.pattern.permute.xlu0 1
      %1715 = vperm.xlu0 %1714, %v1591
      %v1716 = vpop.permute.xlu0 %1715
      %v1718 = vmul.f32 %v1221, %v1712
      %v1719 = vmul.f32 %v1222, %v1712
      %v1720 = vmul.f32 %v1223, %v1716
      %v1721 = vmul.f32 %v1224, %v1716
      %1723 = vset.pattern.permute.xlu0 2
      %1724 = vperm.xlu0 %1723, %v1708
      %v1725 = vpop.permute.xlu0 %1724
      %1728 = vset.pattern.permute.xlu0 2
      %1729 = vperm.xlu0 %1728, %v1709
      %v1730 = vpop.permute.xlu0 %1729
      %v1732 = vadd.f32 %v1718, %v1725
      %v1733 = vadd.f32 %v1719, %v1725
      %v1734 = vadd.f32 %v1720, %v1730
      %v1735 = vadd.f32 %v1721, %v1730
      %v1736 = vxor.u32 %v1732, 2147483648
      %v1737 = vxor.u32 %v1733, 2147483648
      %v1738 = vxor.u32 %v1734, 2147483648
      %v1739 = vxor.u32 %v1735, 2147483648
      %v1740 = vmul.f32 %v1736, 1.442695
      %v1741 = vpow.pop %v1740
      %v1742 = vmul.f32 %v1737, 1.442695
      %v1743 = vpow.pop %v1742
      %v1744 = vmul.f32 %v1738, 1.442695
      %v1745 = vpow.pop %v1744
      %v1746 = vmul.f32 %v1739, 1.442695
      %v1747 = vpow.pop %v1746
      %v1748 = vadd.f32 %v1741, 1.0
      %v1749 = vadd.f32 %v1743, 1.0
      %v1750 = vadd.f32 %v1745, 1.0
      %v1751 = vadd.f32 %v1747, 1.0
      %v1752 = vrcp.pop %v1748
      %v1753 = vmul.f32 1.0, %v1752
      %v1754 = vrcp.pop %v1749
      %v1755 = vmul.f32 1.0, %v1754
      %v1756 = vrcp.pop %v1750
      %v1757 = vmul.f32 1.0, %v1756
      %v1758 = vrcp.pop %v1751
      %v1759 = vmul.f32 1.0, %v1758
      %v1760 = vmul.f32 %v1732, %v1753
      %v1761 = vmul.f32 %v1733, %v1755
      %v1762 = vmul.f32 %v1734, %v1757
      %v1763 = vmul.f32 %v1735, %v1759
      %1764 = vst [vmem:[%s197] sm:$0xff] %v1760
      %1765 = vst [vmem:[%s197 + $0x8] sm:$0xff] %v1761
      %1766 = vst [vmem:[%s197 + $0x10] sm:$0xff] %v1762
      %1767 = vst [vmem:[%s197 + $0x18] sm:$0xff] %v1763
      %p1768 = scmp.lt.s32.totalorder %s15, 1
      %s1769 = scalar_select %p1768, %s15, 1
      %s1770 = smul.addr %s1769, 4
      %s1771 = smul.addr %s1770, 8
      %s1772 = scalar_lea.vmem %s4, %s1771
      // Predicated region
      $region37: #{conv_block_forward.1} parent=35 // pred_check
        %p1773 = pneg %p122
      $region38: #{conv_block_forward.1} parent=35 // pred_check_branch
        %1775 = sbr.rel (%p1773) target = $region40
      $region39: #{conv_block_forward.1} parent=35 // pred_region
        _
      $region40: #{conv_block_forward.1} parent=35 // pred_fallthru
        _
    $region36: #{conv_block_forward.1} parent=5 // pred_fallthru
      _
    %p1776 = scmp.le.s32.totalorder 2, %s10
    // Predicated region
    $region41: #{conv_block_forward.1} parent=5 // pred_check
      %p1777 = pneg %p1776
    $region42: #{conv_block_forward.1} parent=5 // pred_check_branch
      %1779 = sbr.rel (%p1777) target = $region44
    $region43: #{conv_block_forward.1} parent=5 // pred_region
      %s1780 = ssub.s32 %s10, 2
      // Predicated region
      $region45: #{conv_block_forward.1} parent=43 // pred_check
        %p1781 = pneg %p128
      $region46: #{conv_block_forward.1} parent=43 // pred_check_branch
        %1783 = sbr.rel (%p1781) target = $region48
      $region47: #{conv_block_forward.1} parent=43 // pred_region
        %p1784 = scmp.lt.s32.totalorder %s16, 1
        %s1785 = scalar_select %p1784, %s16, 1
        %s1786 = smul.addr %s1785, 4
        %s1787 = smul.addr %s1786, 8
        %s1788 = scalar_lea.vmem %s4, %s1787
      $region48: #{conv_block_forward.1} parent=43 // pred_fallthru
        _
    $region44: #{conv_block_forward.1} parent=5 // pred_fallthru
      _
  $region6: #{conv_block_forward.1} parent=0 // loop_footer
    %s14 = sadd.s32 1, %s10
  $region7: #{conv_block_forward.1} parent=0 // loop_footer_branch
    %9 = sbr.rel target = $region3
  $region8: #{conv_block_forward.1} parent=0 // loop_exit
    _

</llo_original>
